<compile_context>
chip_gen: v7x
topology: tpu7x:2x2x1
jax: 0.10.0
libtpu: 0.0.40
codegen_flags: <defaults>
</compile_context>

<pallas_src>
import math

import jax
import jax.numpy as jnp
from jax.experimental import pallas as pl
from jax.experimental.pallas import tpu as pltpu

# args.* from the original script (argparse) -- fixed deterministically here.
ALPHA = 0.6
BETA = 0.4
K = 2      # any k >= 1 gives identical output (loop re-reads x every iteration)
LANE = 128


def _round_up(v, m):
    return (v + m - 1) // m * m


# --- Pass 1: P = adj @ x ; Q = adj.T @ x  (row tiles of adj / adj.T) ---------------
def _propagate1_kernel(adj_ref, adjt_ref, x_ref, p_ref, q_ref):
    x_bf = x_ref[...].astype(jnp.bfloat16)
    p_ref[...] = jnp.dot(adj_ref[...], x_bf, preferred_element_type=jnp.float32)
    q_ref[...] = jnp.dot(adjt_ref[...], x_bf, preferred_element_type=jnp.float32)


# --- Pass 2: authority = adj.T @ P ; hub = adj @ Q ; s1 = (a*auth + b*hub) @ W1 ----
def _propagate2_kernel(adjt_ref, adj_ref, p_ref, q_ref, w1_ref, s1_ref):
    auth = jnp.dot(adjt_ref[...], p_ref[...].astype(jnp.bfloat16),
                   preferred_element_type=jnp.float32)
    hub = jnp.dot(adj_ref[...], q_ref[...].astype(jnp.bfloat16),
                  preferred_element_type=jnp.float32)
    z = ALPHA * auth + BETA * hub                      # f32 elementwise (VPU)
    s1_ref[...] = jnp.dot(z.astype(jnp.bfloat16), w1_ref[...],
                          preferred_element_type=jnp.float32)


# --- Pass 3: h = relu(adj @ s1 + b1) ; s2 = h @ W2 ---------------------------------
def _encoder1_kernel(adj_ref, s1_ref, b1_ref, w2_ref, s2_ref):
    g = jnp.dot(adj_ref[...], s1_ref[...].astype(jnp.bfloat16),
                preferred_element_type=jnp.float32)
    h = jnp.maximum(g + b1_ref[...], 0.0)              # f32 bias + relu
    # TODO(synk): training-mode dropout would need pltpu.prng_* bits + a mask here.
    s2_ref[...] = jnp.dot(h.astype(jnp.bfloat16), w2_ref[...],
                          preferred_element_type=jnp.float32)


# --- Pass 4: o = adj @ s2 + b2 ; out = log_softmax(o, axis=1) ----------------------
def _encoder2_kernel(adj_ref, s2_ref, b2_ref, out_ref):
    o = jnp.dot(adj_ref[...], s2_ref[...].astype(jnp.bfloat16),
                preferred_element_type=jnp.float32) + b2_ref[...]
    m = jnp.max(o, axis=1, keepdims=True)
    zc = o - m
    lse = jnp.log(jnp.sum(jnp.exp(zc), axis=1, keepdims=True))
    out_ref[...] = zc - lse


def hitsgnn_forward(x, adj, w1, b1, w2, b2, *, tm=256):
    n, nfeat = x.shape
    nhid = w1.shape[1]
    nclass = w2.shape[1]

    tm = min(tm, n)
    assert n % tm == 0 and tm % 8 == 0, "row tile must divide N and be sublane-aligned"

    f_pad = _round_up(nfeat, LANE)
    h_pad = _round_up(nhid, LANE)
    c_pad = _round_up(nclass, LANE)

    # Wrapper-side layout plumbing (XLA): zero-pad the small operands to 128 lanes
    # and cast the MXU operands to bf16. adj.T is computed ONCE here, never in-kernel.
    x_p = jnp.pad(x, ((0, 0), (0, f_pad - nfeat)))
    w1_p = jnp.pad(w1, ((0, f_pad - nfeat), (0, h_pad - nhid))).astype(jnp.bfloat16)
    b1_p = jnp.pad(b1.reshape(1, -1), ((0, 0), (0, h_pad - nhid)))
    w2_p = jnp.pad(w2, ((0, h_pad - nhid), (0, c_pad - nclass))).astype(jnp.bfloat16)
    b2_p = jnp.pad(b2.reshape(1, -1), ((0, 0), (0, c_pad - nclass)),
                   constant_values=-jnp.inf)   # padded classes -> exp(-inf) = 0
    adj_bf = adj.astype(jnp.bfloat16)
    adjt_bf = adj_bf.T

    grid = (n // tm,)
    params = pltpu.CompilerParams(dimension_semantics=("parallel",))

    def adj_tile():
        return pl.BlockSpec((tm, n), lambda i: (i, 0))

    def full(shape):
        return pl.BlockSpec(shape, lambda i: (0,) * len(shape))

    def row_out(width):
        return pl.BlockSpec((tm, width), lambda i: (i, 0))

    f32 = jnp.float32

    p, q = pl.pallas_call(
        _propagate1_kernel,
        grid=grid,
        in_specs=[adj_tile(), adj_tile(), full((n, f_pad))],
        out_specs=(row_out(f_pad), row_out(f_pad)),
        out_shape=(jax.ShapeDtypeStruct((n, f_pad), f32),
                   jax.ShapeDtypeStruct((n, f_pad), f32)),
        compiler_params=params,
    )(adj_bf, adjt_bf, x_p)

    s1 = pl.pallas_call(
        _propagate2_kernel,
        grid=grid,
        in_specs=[adj_tile(), adj_tile(), full((n, f_pad)), full((n, f_pad)),
                  full((f_pad, h_pad))],
        out_specs=row_out(h_pad),
        out_shape=jax.ShapeDtypeStruct((n, h_pad), f32),
        compiler_params=params,
    )(adjt_bf, adj_bf, p, q, w1_p)

    s2 = pl.pallas_call(
        _encoder1_kernel,
        grid=grid,
        in_specs=[adj_tile(), full((n, h_pad)), full((1, h_pad)),
                  full((h_pad, c_pad))],
        out_specs=row_out(c_pad),
        out_shape=jax.ShapeDtypeStruct((n, c_pad), f32),
        compiler_params=params,
    )(adj_bf, s1, b1_p, w2_p)

    out = pl.pallas_call(
        _encoder2_kernel,
        grid=grid,
        in_specs=[adj_tile(), full((n, c_pad)), full((1, c_pad))],
        out_specs=row_out(c_pad),
        out_shape=jax.ShapeDtypeStruct((n, c_pad), f32),
        compiler_params=params,
    )(adj_bf, s2, b2_p)

    return out[:, :nclass]


def init_encoder_params(key, in_features, out_features):
    # Matches Encoder.reset_parameters: uniform(-stdv, stdv), stdv = 1/sqrt(out_features)
    stdv = 1.0 / math.sqrt(out_features)
    kw, kb = jax.random.split(key)
    w = jax.random.uniform(kw, (in_features, out_features), jnp.float32,
                           minval=-stdv, maxval=stdv)
    b = jax.random.uniform(kb, (out_features,), jnp.float32,
                           minval=-stdv, maxval=stdv)
    return w, b


if __name__ == "__main__":
    N, NFEAT, NHID, NCLASS = 128, 32, 32, 8

    key = jax.random.PRNGKey(0)
    k_x, k_adj, k_l1, k_l2 = jax.random.split(key, 4)

    x = jax.random.normal(k_x, (N, NFEAT), jnp.float32)
    # Dense, row-normalized random adjacency (deterministic).
    adj_raw = (jax.random.uniform(k_adj, (N, N), jnp.float32) < 0.1).astype(jnp.float32)
    adj_raw = adj_raw + jnp.eye(N, dtype=jnp.float32)
    adj = adj_raw / jnp.sum(adj_raw, axis=1, keepdims=True)

    w1, b1 = init_encoder_params(k_l1, NFEAT, NHID)
    w2, b2 = init_encoder_params(k_l2, NHID, NCLASS)

    fwd = jax.jit(hitsgnn_forward, static_argnames=("tm",))
    out = fwd(x, adj, w1, b1, w2, b2, tm=64)   # tm=64 -> 2 row tiles on the grid
    jax.block_until_ready(out)

    # Reference in plain f32 JAX (same math) to validate the kernels.
    authority = adj.T @ (adj @ x)
    hub = adj @ (adj.T @ x)
    z = ALPHA * authority + BETA * hub
    h = jnp.maximum(adj @ (z @ w1) + b1, 0.0)
    o = adj @ (h @ w2) + b2
    ref = jax.nn.log_softmax(o, axis=1)

    assert out.shape == (N, NCLASS)
    # bf16 MXU inputs (f32 accumulation) -> tolerance relaxed vs pure-f32.
    assert jnp.allclose(out, ref, atol=3e-2, rtol=3e-2), float(jnp.max(jnp.abs(out - ref)))

    print("KERNEL_OK")
</pallas_src>

<mosaic_0001>
module attributes {stable_mosaic.version = 11 : i64} {
  func.func @_propagate1_kernel(%arg0: i32, %arg1: memref<64x128xbf16, #tpu.memory_space<vmem>>, %arg2: memref<64x128xbf16, #tpu.memory_space<vmem>>, %arg3: memref<128x128xf32, #tpu.memory_space<vmem>>, %arg4: memref<64x128xf32, #tpu.memory_space<vmem>>, %arg5: memref<64x128xf32, #tpu.memory_space<vmem>>) attributes {dimension_semantics = [#tpu.dimension_semantics<parallel>], iteration_bounds = array<i64: 2>, scalar_prefetch = 0 : i64, scratch_operands = 0 : i64, tpu.core_type = #tpu.core_type<tc>, window_params = [{transform_indices = @transform_0, window_bounds = array<i64: 64, 128>}, {transform_indices = @transform_1, window_bounds = array<i64: 64, 128>}, {pipeline_mode = #tpu.pipeline_mode<synchronous>, transform_indices = @transform_2, window_bounds = array<i64: 128, 128>}, {transform_indices = @transform_3, window_bounds = array<i64: 64, 128>}, {transform_indices = @transform_4, window_bounds = array<i64: 64, 128>}]} {
    %c0 = arith.constant 0 : index
    %c0_0 = arith.constant 0 : index
    %0 = vector.load %arg3[%c0, %c0_0] : memref<128x128xf32, #tpu.memory_space<vmem>>, vector<128x128xf32>
    %1 = arith.truncf %0 : vector<128x128xf32> to vector<128x128xbf16>
    %c0_1 = arith.constant 0 : index
    %c0_2 = arith.constant 0 : index
    %2 = vector.load %arg1[%c0_1, %c0_2] : memref<64x128xbf16, #tpu.memory_space<vmem>>, vector<64x128xbf16>
    %cst = arith.constant dense<0.000000e+00> : vector<64x128xf32>
    %3 = tpu.matmul %2, %1, %cst {dimension_numbers = #tpu.dot_dimension_numbers<[1], [0], [0], [1], [0, 0, 1, 1], [], []>} : vector<64x128xbf16>, vector<128x128xbf16>, vector<64x128xf32> -> vector<64x128xf32>
    %c0_3 = arith.constant 0 : index
    %c0_4 = arith.constant 0 : index
    %4 = vector.load %arg4[%c0_3, %c0_4] : memref<64x128xf32, #tpu.memory_space<vmem>>, vector<64x128xf32>
    tpu.vector_store %arg4[%c0_3, %c0_4], %3 {strides = array<i32>} : memref<64x128xf32, #tpu.memory_space<vmem>>, vector<64x128xf32>,
    %c0_5 = arith.constant 0 : index
    %c0_6 = arith.constant 0 : index
    %5 = vector.load %arg2[%c0_5, %c0_6] : memref<64x128xbf16, #tpu.memory_space<vmem>>, vector<64x128xbf16>
    %cst_7 = arith.constant dense<0.000000e+00> : vector<64x128xf32>
    %6 = tpu.matmul %5, %1, %cst_7 {dimension_numbers = #tpu.dot_dimension_numbers<[1], [0], [0], [1], [0, 0, 1, 1], [], []>} : vector<64x128xbf16>, vector<128x128xbf16>, vector<64x128xf32> -> vector<64x128xf32>
    %c0_8 = arith.constant 0 : index
    %c0_9 = arith.constant 0 : index
    %7 = vector.load %arg5[%c0_8, %c0_9] : memref<64x128xf32, #tpu.memory_space<vmem>>, vector<64x128xf32>
    tpu.vector_store %arg5[%c0_8, %c0_9], %6 {strides = array<i32>} : memref<64x128xf32, #tpu.memory_space<vmem>>, vector<64x128xf32>,
    return
  }
  func.func @transform_0(%arg0: i32) -> (i32, i32) {
    %c0_i32 = arith.constant 0 : i32
    %c0_i32_0 = arith.constant 0 : i32
    return %arg0, %c0_i32 : i32, i32
  }
  func.func @transform_1(%arg0: i32) -> (i32, i32) {
    %c0_i32 = arith.constant 0 : i32
    %c0_i32_0 = arith.constant 0 : i32
    return %arg0, %c0_i32 : i32, i32
  }
  func.func @transform_2(%arg0: i32) -> (i32, i32) {
    %c0_i32 = arith.constant 0 : i32
    %c0_i32_0 = arith.constant 0 : i32
    %c0_i32_1 = arith.constant 0 : i32
    return %c0_i32, %c0_i32_0 : i32, i32
  }
  func.func @transform_3(%arg0: i32) -> (i32, i32) {
    %c0_i32 = arith.constant 0 : i32
    %c0_i32_0 = arith.constant 0 : i32
    return %arg0, %c0_i32 : i32, i32
  }
  func.func @transform_4(%arg0: i32) -> (i32, i32) {
    %c0_i32 = arith.constant 0 : i32
    %c0_i32_0 = arith.constant 0 : i32
    return %arg0, %c0_i32 : i32, i32
  }
}

module attributes {stable_mosaic.version = 11 : i64} {
  func.func @_propagate2_kernel(%arg0: i32, %arg1: memref<64x128xbf16, #tpu.memory_space<vmem>>, %arg2: memref<64x128xbf16, #tpu.memory_space<vmem>>, %arg3: memref<128x128xf32, #tpu.memory_space<vmem>>, %arg4: memref<128x128xf32, #tpu.memory_space<vmem>>, %arg5: memref<128x128xbf16, #tpu.memory_space<vmem>>, %arg6: memref<64x128xf32, #tpu.memory_space<vmem>>) attributes {dimension_semantics = [#tpu.dimension_semantics<parallel>], iteration_bounds = array<i64: 2>, scalar_prefetch = 0 : i64, scratch_operands = 0 : i64, tpu.core_type = #tpu.core_type<tc>, window_params = [{transform_indices = @transform_0, window_bounds = array<i64: 64, 128>}, {transform_indices = @transform_1, window_bounds = array<i64: 64, 128>}, {pipeline_mode = #tpu.pipeline_mode<synchronous>, transform_indices = @transform_2, window_bounds = array<i64: 128, 128>}, {pipeline_mode = #tpu.pipeline_mode<synchronous>, transform_indices = @transform_3, window_bounds = array<i64: 128, 128>}, {pipeline_mode = #tpu.pipeline_mode<synchronous>, transform_indices = @transform_4, window_bounds = array<i64: 128, 128>}, {transform_indices = @transform_5, window_bounds = array<i64: 64, 128>}]} {
    %c0 = arith.constant 0 : index
    %c0_0 = arith.constant 0 : index
    %0 = vector.load %arg1[%c0, %c0_0] : memref<64x128xbf16, #tpu.memory_space<vmem>>, vector<64x128xbf16>
    %c0_1 = arith.constant 0 : index
    %c0_2 = arith.constant 0 : index
    %1 = vector.load %arg3[%c0_1, %c0_2] : memref<128x128xf32, #tpu.memory_space<vmem>>, vector<128x128xf32>
    %2 = arith.truncf %1 : vector<128x128xf32> to vector<128x128xbf16>
    %cst = arith.constant dense<0.000000e+00> : vector<64x128xf32>
    %3 = tpu.matmul %0, %2, %cst {dimension_numbers = #tpu.dot_dimension_numbers<[1], [0], [0], [1], [0, 0, 1, 1], [], []>} : vector<64x128xbf16>, vector<128x128xbf16>, vector<64x128xf32> -> vector<64x128xf32>
    %c0_3 = arith.constant 0 : index
    %c0_4 = arith.constant 0 : index
    %4 = vector.load %arg2[%c0_3, %c0_4] : memref<64x128xbf16, #tpu.memory_space<vmem>>, vector<64x128xbf16>
    %c0_5 = arith.constant 0 : index
    %c0_6 = arith.constant 0 : index
    %5 = vector.load %arg4[%c0_5, %c0_6] : memref<128x128xf32, #tpu.memory_space<vmem>>, vector<128x128xf32>
    %6 = arith.truncf %5 : vector<128x128xf32> to vector<128x128xbf16>
    %cst_7 = arith.constant dense<0.000000e+00> : vector<64x128xf32>
    %7 = tpu.matmul %4, %6, %cst_7 {dimension_numbers = #tpu.dot_dimension_numbers<[1], [0], [0], [1], [0, 0, 1, 1], [], []>} : vector<64x128xbf16>, vector<128x128xbf16>, vector<64x128xf32> -> vector<64x128xf32>
    %cst_8 = arith.constant 6.000000e-01 : f32
    %8 = vector.broadcast %cst_8 : f32 to vector<64x128xf32>
    %9 = arith.mulf %8, %3 : vector<64x128xf32>
    %cst_9 = arith.constant 4.000000e-01 : f32
    %10 = vector.broadcast %cst_9 : f32 to vector<64x128xf32>
    %11 = arith.mulf %10, %7 : vector<64x128xf32>
    %12 = arith.addf %9, %11 : vector<64x128xf32>
    %13 = arith.truncf %12 : vector<64x128xf32> to vector<64x128xbf16>
    %c0_10 = arith.constant 0 : index
    %c0_11 = arith.constant 0 : index
    %14 = vector.load %arg5[%c0_10, %c0_11] : memref<128x128xbf16, #tpu.memory_space<vmem>>, vector<128x128xbf16>
    %cst_12 = arith.constant dense<0.000000e+00> : vector<64x128xf32>
    %15 = tpu.matmul %13, %14, %cst_12 {dimension_numbers = #tpu.dot_dimension_numbers<[1], [0], [0], [1], [0, 0, 1, 1], [], []>} : vector<64x128xbf16>, vector<128x128xbf16>, vector<64x128xf32> -> vector<64x128xf32>
    %c0_13 = arith.constant 0 : index
    %c0_14 = arith.constant 0 : index
    %16 = vector.load %arg6[%c0_13, %c0_14] : memref<64x128xf32, #tpu.memory_space<vmem>>, vector<64x128xf32>
    tpu.vector_store %arg6[%c0_13, %c0_14], %15 {strides = array<i32>} : memref<64x128xf32, #tpu.memory_space<vmem>>, vector<64x128xf32>,
    return
  }
  func.func @transform_0(%arg0: i32) -> (i32, i32) {
    %c0_i32 = arith.constant 0 : i32
    %c0_i32_0 = arith.constant 0 : i32
    return %arg0, %c0_i32 : i32, i32
  }
  func.func @transform_1(%arg0: i32) -> (i32, i32) {
    %c0_i32 = arith.constant 0 : i32
    %c0_i32_0 = arith.constant 0 : i32
    return %arg0, %c0_i32 : i32, i32
  }
  func.func @transform_2(%arg0: i32) -> (i32, i32) {
    %c0_i32 = arith.constant 0 : i32
    %c0_i32_0 = arith.constant 0 : i32
    %c0_i32_1 = arith.constant 0 : i32
    return %c0_i32, %c0_i32_0 : i32, i32
  }
  func.func @transform_3(%arg0: i32) -> (i32, i32) {
    %c0_i32 = arith.constant 0 : i32
    %c0_i32_0 = arith.constant 0 : i32
    %c0_i32_1 = arith.constant 0 : i32
    return %c0_i32, %c0_i32_0 : i32, i32
  }
  func.func @transform_4(%arg0: i32) -> (i32, i32) {
    %c0_i32 = arith.constant 0 : i32
    %c0_i32_0 = arith.constant 0 : i32
    %c0_i32_1 = arith.constant 0 : i32
    return %c0_i32, %c0_i32_0 : i32, i32
  }
  func.func @transform_5(%arg0: i32) -> (i32, i32) {
    %c0_i32 = arith.constant 0 : i32
    %c0_i32_0 = arith.constant 0 : i32
    return %arg0, %c0_i32 : i32, i32
  }
}

module attributes {stable_mosaic.version = 11 : i64} {
  func.func @_encoder1_kernel(%arg0: i32, %arg1: memref<64x128xbf16, #tpu.memory_space<vmem>>, %arg2: memref<128x128xf32, #tpu.memory_space<vmem>>, %arg3: memref<1x128xf32, #tpu.memory_space<vmem>>, %arg4: memref<128x128xbf16, #tpu.memory_space<vmem>>, %arg5: memref<64x128xf32, #tpu.memory_space<vmem>>) attributes {dimension_semantics = [#tpu.dimension_semantics<parallel>], iteration_bounds = array<i64: 2>, scalar_prefetch = 0 : i64, scratch_operands = 0 : i64, tpu.core_type = #tpu.core_type<tc>, window_params = [{transform_indices = @transform_0, window_bounds = array<i64: 64, 128>}, {pipeline_mode = #tpu.pipeline_mode<synchronous>, transform_indices = @transform_1, window_bounds = array<i64: 128, 128>}, {pipeline_mode = #tpu.pipeline_mode<synchronous>, transform_indices = @transform_2, window_bounds = array<i64: 1, 128>}, {pipeline_mode = #tpu.pipeline_mode<synchronous>, transform_indices = @transform_3, window_bounds = array<i64: 128, 128>}, {transform_indices = @transform_4, window_bounds = array<i64: 64, 128>}]} {
    %c0 = arith.constant 0 : index
    %c0_0 = arith.constant 0 : index
    %0 = vector.load %arg1[%c0, %c0_0] : memref<64x128xbf16, #tpu.memory_space<vmem>>, vector<64x128xbf16>
    %c0_1 = arith.constant 0 : index
    %c0_2 = arith.constant 0 : index
    %1 = vector.load %arg2[%c0_1, %c0_2] : memref<128x128xf32, #tpu.memory_space<vmem>>, vector<128x128xf32>
    %2 = arith.truncf %1 : vector<128x128xf32> to vector<128x128xbf16>
    %cst = arith.constant dense<0.000000e+00> : vector<64x128xf32>
    %3 = tpu.matmul %0, %2, %cst {dimension_numbers = #tpu.dot_dimension_numbers<[1], [0], [0], [1], [0, 0, 1, 1], [], []>} : vector<64x128xbf16>, vector<128x128xbf16>, vector<64x128xf32> -> vector<64x128xf32>
    %c0_3 = arith.constant 0 : index
    %c0_4 = arith.constant 0 : index
    %4 = vector.load %arg3[%c0_3, %c0_4] : memref<1x128xf32, #tpu.memory_space<vmem>>, vector<1x128xf32>
    %5 = vector.broadcast %4 : vector<1x128xf32> to vector<64x128xf32>
    %6 = arith.addf %3, %5 : vector<64x128xf32>
    %cst_5 = arith.constant 0.000000e+00 : f32
    %7 = vector.broadcast %cst_5 : f32 to vector<64x128xf32>
    %8 = arith.maximumf %6, %7 : vector<64x128xf32>
    %9 = arith.truncf %8 : vector<64x128xf32> to vector<64x128xbf16>
    %c0_6 = arith.constant 0 : index
    %c0_7 = arith.constant 0 : index
    %10 = vector.load %arg4[%c0_6, %c0_7] : memref<128x128xbf16, #tpu.memory_space<vmem>>, vector<128x128xbf16>
    %cst_8 = arith.constant dense<0.000000e+00> : vector<64x128xf32>
    %11 = tpu.matmul %9, %10, %cst_8 {dimension_numbers = #tpu.dot_dimension_numbers<[1], [0], [0], [1], [0, 0, 1, 1], [], []>} : vector<64x128xbf16>, vector<128x128xbf16>, vector<64x128xf32> -> vector<64x128xf32>
    %c0_9 = arith.constant 0 : index
    %c0_10 = arith.constant 0 : index
    %12 = vector.load %arg5[%c0_9, %c0_10] : memref<64x128xf32, #tpu.memory_space<vmem>>, vector<64x128xf32>
    tpu.vector_store %arg5[%c0_9, %c0_10], %11 {strides = array<i32>} : memref<64x128xf32, #tpu.memory_space<vmem>>, vector<64x128xf32>,
    return
  }
  func.func @transform_0(%arg0: i32) -> (i32, i32) {
    %c0_i32 = arith.constant 0 : i32
    %c0_i32_0 = arith.constant 0 : i32
    return %arg0, %c0_i32 : i32, i32
  }
  func.func @transform_1(%arg0: i32) -> (i32, i32) {
    %c0_i32 = arith.constant 0 : i32
    %c0_i32_0 = arith.constant 0 : i32
    %c0_i32_1 = arith.constant 0 : i32
    return %c0_i32, %c0_i32_0 : i32, i32
  }
  func.func @transform_2(%arg0: i32) -> (i32, i32) {
    %c0_i32 = arith.constant 0 : i32
    %c0_i32_0 = arith.constant 0 : i32
    %c0_i32_1 = arith.constant 0 : i32
    return %c0_i32, %c0_i32_0 : i32, i32
  }
  func.func @transform_3(%arg0: i32) -> (i32, i32) {
    %c0_i32 = arith.constant 0 : i32
    %c0_i32_0 = arith.constant 0 : i32
    %c0_i32_1 = arith.constant 0 : i32
    return %c0_i32, %c0_i32_0 : i32, i32
  }
  func.func @transform_4(%arg0: i32) -> (i32, i32) {
    %c0_i32 = arith.constant 0 : i32
    %c0_i32_0 = arith.constant 0 : i32
    return %arg0, %c0_i32 : i32, i32
  }
}

module attributes {stable_mosaic.version = 11 : i64} {
  func.func @_encoder2_kernel(%arg0: i32, %arg1: memref<64x128xbf16, #tpu.memory_space<vmem>>, %arg2: memref<128x128xf32, #tpu.memory_space<vmem>>, %arg3: memref<1x128xf32, #tpu.memory_space<vmem>>, %arg4: memref<64x128xf32, #tpu.memory_space<vmem>>) attributes {dimension_semantics = [#tpu.dimension_semantics<parallel>], iteration_bounds = array<i64: 2>, scalar_prefetch = 0 : i64, scratch_operands = 0 : i64, tpu.core_type = #tpu.core_type<tc>, window_params = [{transform_indices = @transform_0, window_bounds = array<i64: 64, 128>}, {pipeline_mode = #tpu.pipeline_mode<synchronous>, transform_indices = @transform_1, window_bounds = array<i64: 128, 128>}, {pipeline_mode = #tpu.pipeline_mode<synchronous>, transform_indices = @transform_2, window_bounds = array<i64: 1, 128>}, {transform_indices = @transform_3, window_bounds = array<i64: 64, 128>}]} {
    %c0 = arith.constant 0 : index
    %c0_0 = arith.constant 0 : index
    %0 = vector.load %arg1[%c0, %c0_0] : memref<64x128xbf16, #tpu.memory_space<vmem>>, vector<64x128xbf16>
    %c0_1 = arith.constant 0 : index
    %c0_2 = arith.constant 0 : index
    %1 = vector.load %arg2[%c0_1, %c0_2] : memref<128x128xf32, #tpu.memory_space<vmem>>, vector<128x128xf32>
    %2 = arith.truncf %1 : vector<128x128xf32> to vector<128x128xbf16>
    %cst = arith.constant dense<0.000000e+00> : vector<64x128xf32>
    %3 = tpu.matmul %0, %2, %cst {dimension_numbers = #tpu.dot_dimension_numbers<[1], [0], [0], [1], [0, 0, 1, 1], [], []>} : vector<64x128xbf16>, vector<128x128xbf16>, vector<64x128xf32> -> vector<64x128xf32>
    %c0_3 = arith.constant 0 : index
    %c0_4 = arith.constant 0 : index
    %4 = vector.load %arg3[%c0_3, %c0_4] : memref<1x128xf32, #tpu.memory_space<vmem>>, vector<1x128xf32>
    %5 = vector.broadcast %4 : vector<1x128xf32> to vector<64x128xf32>
    %6 = arith.addf %3, %5 : vector<64x128xf32>
    %cst_5 = arith.constant dense<0xFF800000> : vector<64xf32>
    %7 = vector.multi_reduction <maximumf>, %6, %cst_5 [1] : vector<64x128xf32> to vector<64xf32>
    %8 = vector.shape_cast %7 : vector<64xf32> to vector<64x1xf32>
    %9 = vector.broadcast %8 : vector<64x1xf32> to vector<64x128xf32>
    %10 = arith.subf %6, %9 : vector<64x128xf32>
    %11 = math.exp %10 : vector<64x128xf32>
    %cst_6 = arith.constant dense<0.000000e+00> : vector<64xf32>
    %12 = vector.multi_reduction <add>, %11, %cst_6 [1] : vector<64x128xf32> to vector<64xf32>
    %13 = vector.shape_cast %12 : vector<64xf32> to vector<64x1xf32>
    %14 = math.log %13 : vector<64x1xf32>
    %15 = vector.broadcast %14 : vector<64x1xf32> to vector<64x128xf32>
    %16 = arith.subf %10, %15 : vector<64x128xf32>
    %c0_7 = arith.constant 0 : index
    %c0_8 = arith.constant 0 : index
    %17 = vector.load %arg4[%c0_7, %c0_8] : memref<64x128xf32, #tpu.memory_space<vmem>>, vector<64x128xf32>
    tpu.vector_store %arg4[%c0_7, %c0_8], %16 {strides = array<i32>} : memref<64x128xf32, #tpu.memory_space<vmem>>, vector<64x128xf32>,
    return
  }
  func.func @transform_0(%arg0: i32) -> (i32, i32) {
    %c0_i32 = arith.constant 0 : i32
    %c0_i32_0 = arith.constant 0 : i32
    return %arg0, %c0_i32 : i32, i32
  }
  func.func @transform_1(%arg0: i32) -> (i32, i32) {
    %c0_i32 = arith.constant 0 : i32
    %c0_i32_0 = arith.constant 0 : i32
    %c0_i32_1 = arith.constant 0 : i32
    return %c0_i32, %c0_i32_0 : i32, i32
  }
  func.func @transform_2(%arg0: i32) -> (i32, i32) {
    %c0_i32 = arith.constant 0 : i32
    %c0_i32_0 = arith.constant 0 : i32
    %c0_i32_1 = arith.constant 0 : i32
    return %c0_i32, %c0_i32_0 : i32, i32
  }
  func.func @transform_3(%arg0: i32) -> (i32, i32) {
    %c0_i32 = arith.constant 0 : i32
    %c0_i32_0 = arith.constant 0 : i32
    return %arg0, %c0_i32 : i32, i32
  }
}

</mosaic_0001>

<llo_original>
// kernel: hitsgnn_forward.6
$region0: #{hitsgnn_forward.6}
  #allocation0 [shape = 'u32[]', space=smem, size = 0x4, offset = 0x4, fixed_abs, tag = 'smem constant byte address 0x4 - core index']
  #allocation1 [shape = 'u32[144,128]{1,0:T(1,128)}', space=vmem, size = 0x12000, scoped, tag = 'internal scratch']
  %s0 = inlined_call_operand.vmem [shape: bf16[128,128], index: 0, kind: input, shape index: {}]
  %s1 = inlined_call_operand.vmem [shape: f32[128,128], index: 1, kind: input, shape index: {}]
  %s2 = inlined_call_operand.vmem [shape: f32[1,128], index: 2, kind: input, shape index: {}]
  %s3 = inlined_call_operand.vmem [shape: bf16[128,128], index: 3, kind: input, shape index: {}]
  %s4 = inlined_call_operand.vmem [shape: f32[128,128], index: 4, kind: output, shape index: {}]
  %s5 = sld [smem:[#allocation0]]
  $region49: #{hitsgnn_forward.6} parent=0
    _
  %s7 = ssub.s32 1, %s5
  %s8 = scalar_select 0, %s7, %s5
  loop: start=0, step=1, limit=4
  $region2: #{hitsgnn_forward.6} parent=0 // loop_pre_header
    _
  $region3: #{hitsgnn_forward.6} parent=0 // loop_header
    %s10 = sphi 0, %s14
    %p11 = scmp.ge.s32.totalorder %s10, 4
    %s20 = sphi 0, %s22
    %s23 = sphi 0, %s20
    %s24 = sphi 0, %s23
    %s40 = sphi 0, %s24
    %s44 = sphi 0, %s44
    %s46 = sphi 0, %s44
    %s47 = sphi 0, %s46
    %s61 = sphi 0, %s47
    %s65 = sphi 0, %s65
    %s67 = sphi 0, %s65
    %s68 = sphi 0, %s67
    %s82 = sphi 0, %s68
    %s86 = sphi 0, %s86
    %s88 = sphi 0, %s86
    %s89 = sphi 0, %s88
    %s103 = sphi 0, %s89
    %s109 = sphi 0, %s111
    %s112 = sphi 0, %s109
    %s113 = sphi 0, %s112
    %s129 = sphi 0, %s113
  $region4: #{hitsgnn_forward.6} parent=0 // loop_header_branch
    %13 = sbr.rel (%p11) target = $region8
  $region5: #{hitsgnn_forward.6} parent=0 // loop_body
    %s15 = ssub.s32 %s10, 1
    %s16 = ssub.s32 %s10, 2
    %s17 = sadd.s32 %s10, 1
    %s18 = ssub.s32 %s10, %s17
    %p19 = scmp.eq.s32.totalorder %s18, 0
    %s21 = sadd.s32 %s20, 1
    %s22 = scalar_select %p19, %s20, %s21
    %p25 = pneg %p19
    %p26 = scmp.eq.s32.totalorder %s10, 1
    %p27 = por %p25, %p26
    %p28 = scmp.ne.s32.totalorder %s20, %s23
    %p29 = scmp.eq.s32.totalorder %s10, 0
    %p30 = por %p28, %p29
    %p31 = scmp.ne.s32.totalorder %s20, %s23
    %p32 = scmp.eq.s32.totalorder %s15, 1
    %p33 = por %p31, %p32
    %p34 = scmp.ne.s32.totalorder %s23, %s24
    %p35 = scmp.eq.s32.totalorder %s15, 0
    %p36 = por %p34, %p35
    %p37 = scmp.ne.s32.totalorder %s23, %s24
    %p38 = scmp.eq.s32.totalorder %s16, 1
    %p39 = por %p37, %p38
    %p41 = scmp.ne.s32.totalorder %s24, %s40
    %p42 = scmp.eq.s32.totalorder %s16, 0
    %p43 = por %p41, %p42
    %s45 = sadd.s32 %s44, 1
    %p48 = scmp.eq.s32.totalorder %s10, 1
    %p49 = scmp.ne.s32.totalorder %s44, %s46
    %p50 = scmp.eq.s32.totalorder %s10, 0
    %p51 = por %p49, %p50
    %p52 = scmp.ne.s32.totalorder %s44, %s46
    %p53 = scmp.eq.s32.totalorder %s15, 1
    %p54 = por %p52, %p53
    %p55 = scmp.ne.s32.totalorder %s46, %s47
    %p56 = scmp.eq.s32.totalorder %s15, 0
    %p57 = por %p55, %p56
    %p58 = scmp.ne.s32.totalorder %s46, %s47
    %p59 = scmp.eq.s32.totalorder %s16, 1
    %p60 = por %p58, %p59
    %p62 = scmp.ne.s32.totalorder %s47, %s61
    %p63 = scmp.eq.s32.totalorder %s16, 0
    %p64 = por %p62, %p63
    %s66 = sadd.s32 %s65, 1
    %p69 = scmp.eq.s32.totalorder %s10, 1
    %p70 = scmp.ne.s32.totalorder %s65, %s67
    %p71 = scmp.eq.s32.totalorder %s10, 0
    %p72 = por %p70, %p71
    %p73 = scmp.ne.s32.totalorder %s65, %s67
    %p74 = scmp.eq.s32.totalorder %s15, 1
    %p75 = por %p73, %p74
    %p76 = scmp.ne.s32.totalorder %s67, %s68
    %p77 = scmp.eq.s32.totalorder %s15, 0
    %p78 = por %p76, %p77
    %p79 = scmp.ne.s32.totalorder %s67, %s68
    %p80 = scmp.eq.s32.totalorder %s16, 1
    %p81 = por %p79, %p80
    %p83 = scmp.ne.s32.totalorder %s68, %s82
    %p84 = scmp.eq.s32.totalorder %s16, 0
    %p85 = por %p83, %p84
    %s87 = sadd.s32 %s86, 1
    %p90 = scmp.eq.s32.totalorder %s10, 1
    %p91 = scmp.ne.s32.totalorder %s86, %s88
    %p92 = scmp.eq.s32.totalorder %s10, 0
    %p93 = por %p91, %p92
    %p94 = scmp.ne.s32.totalorder %s86, %s88
    %p95 = scmp.eq.s32.totalorder %s15, 1
    %p96 = por %p94, %p95
    %p97 = scmp.ne.s32.totalorder %s88, %s89
    %p98 = scmp.eq.s32.totalorder %s15, 0
    %p99 = por %p97, %p98
    %p100 = scmp.ne.s32.totalorder %s88, %s89
    %p101 = scmp.eq.s32.totalorder %s16, 1
    %p102 = por %p100, %p101
    %p104 = scmp.ne.s32.totalorder %s89, %s103
    %p105 = scmp.eq.s32.totalorder %s16, 0
    %p106 = por %p104, %p105
    %s107 = ssub.s32 %s10, %s17
    %p108 = scmp.eq.s32.totalorder %s107, 0
    %s110 = sadd.s32 %s109, 1
    %s111 = scalar_select %p108, %s109, %s110
    %p114 = pneg %p108
    %p115 = scmp.eq.s32.totalorder %s10, 1
    %p116 = por %p114, %p115
    %p117 = scmp.ne.s32.totalorder %s109, %s112
    %p118 = scmp.eq.s32.totalorder %s10, 0
    %p119 = por %p117, %p118
    %p120 = scmp.ne.s32.totalorder %s109, %s112
    %p121 = scmp.eq.s32.totalorder %s15, 1
    %p122 = por %p120, %p121
    %p123 = scmp.ne.s32.totalorder %s112, %s113
    %p124 = scmp.eq.s32.totalorder %s15, 0
    %p125 = por %p123, %p124
    %p126 = scmp.ne.s32.totalorder %s112, %s113
    %p127 = scmp.eq.s32.totalorder %s16, 1
    %p128 = por %p126, %p127
    %p130 = scmp.ne.s32.totalorder %s113, %s129
    %p131 = scmp.eq.s32.totalorder %s16, 0
    %p132 = por %p130, %p131
    %p133 = scmp.le.s32.totalorder 1, %s10
    %p134 = scmp.lt.s32.totalorder %s10, 3
    %p135 = pnand %p133, %p134
    %p136 = pneg %p135
    // Predicated region
    $region9: #{hitsgnn_forward.6} parent=5 // pred_check
      _
    $region10: #{hitsgnn_forward.6} parent=5 // pred_check_branch
      %138 = sbr.rel (%p135) target = $region12
    $region11: #{hitsgnn_forward.6} parent=5 // pred_region
      %s139 = ssub.s32 %s10, 1
      // Predicated region
      $region13: #{hitsgnn_forward.6} parent=11 // pred_check
        %p140 = pneg %p57
      $region14: #{hitsgnn_forward.6} parent=11 // pred_check_branch
        %142 = sbr.rel (%p140) target = $region16
      $region15: #{hitsgnn_forward.6} parent=11 // pred_region
        _
      $region16: #{hitsgnn_forward.6} parent=11 // pred_fallthru
        _
      // Predicated region
      $region17: #{hitsgnn_forward.6} parent=11 // pred_check
        %p143 = pneg %p78
      $region18: #{hitsgnn_forward.6} parent=11 // pred_check_branch
        %145 = sbr.rel (%p143) target = $region20
      $region19: #{hitsgnn_forward.6} parent=11 // pred_region
        _
      $region20: #{hitsgnn_forward.6} parent=11 // pred_fallthru
        _
      // Predicated region
      $region21: #{hitsgnn_forward.6} parent=11 // pred_check
        %p146 = pneg %p99
      $region22: #{hitsgnn_forward.6} parent=11 // pred_check_branch
        %148 = sbr.rel (%p146) target = $region24
      $region23: #{hitsgnn_forward.6} parent=11 // pred_region
        _
      $region24: #{hitsgnn_forward.6} parent=11 // pred_fallthru
        _
    $region12: #{hitsgnn_forward.6} parent=5 // pred_fallthru
      _
    %p149 = scmp.lt.s32.totalorder %s10, 2
    // Predicated region
    $region25: #{hitsgnn_forward.6} parent=5 // pred_check
      %p150 = pneg %p149
    $region26: #{hitsgnn_forward.6} parent=5 // pred_check_branch
      %152 = sbr.rel (%p150) target = $region28
    $region27: #{hitsgnn_forward.6} parent=5 // pred_region
      // Predicated region
      $region29: #{hitsgnn_forward.6} parent=27 // pred_check
        %p153 = pneg %p30
      $region30: #{hitsgnn_forward.6} parent=27 // pred_check_branch
        %155 = sbr.rel (%p153) target = $region32
      $region31: #{hitsgnn_forward.6} parent=27 // pred_region
        %s156 = smul.u32 8, %s10
        %p157 = scmp.lt.s32.totalorder %s156, 15
        %s158 = scalar_select %p157, %s156, 15
        %s159 = smul.addr %s158, 4
        %s160 = scalar_lea.vmem %s0, %s159
        %s161 = smul.u32 8, %s10
      $region32: #{hitsgnn_forward.6} parent=27 // pred_fallthru
        _
    $region28: #{hitsgnn_forward.6} parent=5 // pred_fallthru
      _
    %p162 = scmp.le.s32.totalorder 1, %s10
    %p163 = scmp.lt.s32.totalorder %s10, 3
    %p164 = pnand %p162, %p163
    %p165 = pneg %p164
    // Predicated region
    $region33: #{hitsgnn_forward.6} parent=5 // pred_check
      _
    $region34: #{hitsgnn_forward.6} parent=5 // pred_check_branch
      %167 = sbr.rel (%p164) target = $region36
    $region35: #{hitsgnn_forward.6} parent=5 // pred_region
      %s168 = ssub.s32 %s10, 1
      %s169 = smul.u32 8, %s15
      %p170 = scmp.lt.s32.totalorder %s169, 15
      %s171 = scalar_select %p170, %s169, 15
      %s172 = smul.addr %s171, 4
      %s173 = scalar_lea.vmem %s0, %s172
      %p174 = pneg %p36
      %p175 = pneg %p33
      %p176 = pneg %p57
      %p177 = pneg %p54
      %p178 = pneg %p78
      %p179 = pneg %p75
      %p180 = pneg %p99
      %p181 = pneg %p96
      %p182 = pneg %p125
      %p183 = pneg %p122
      %s184 = smul.u32 8, %s15
      %p185 = scmp.lt.s32.totalorder %s184, 15
      %s186 = scalar_select %p185, %s184, 15
      %s187 = smul.addr %s186, 8
      %s188 = scalar_lea.vmem %s4, %s187
      %s189 = smul.u32 8, %s15
      %p190 = scmp.lt.s32.totalorder %s189, 15
      %s191 = scalar_select %p190, %s189, 15
      %s192 = smul.addr %s191, 4
      %s193 = scalar_lea.vmem %s0, %s192
      %s194 = smul.u32 8, %s15
      %s195 = smul.u32 8, %s15
      %p196 = scmp.lt.s32.totalorder %s195, 15
      %s197 = scalar_select %p196, %s195, 15
      %s198 = smul.addr %s197, 8
      %s199 = scalar_lea.vmem %s4, %s198
      %s200 = smul.u32 8, %s15
      %v202 = vld [vmem:[%s193] sm:$0xf]
      %v203 = vld [vmem:[%s193 + $0x4] sm:$0xf]
      %v204 = vld [vmem:[%s193 + $0x8] sm:$0xf]
      %v205 = vld [vmem:[%s193 + $0xc] sm:$0xf]
      %v206 = vld [vmem:[%s193 + $0x10] sm:$0xf]
      %v207 = vld [vmem:[%s193 + $0x14] sm:$0xf]
      %v208 = vld [vmem:[%s193 + $0x18] sm:$0xf]
      %v209 = vld [vmem:[%s193 + $0x1c] sm:$0xf]
      %v210 = vld [vmem:[%s1] sm:$0xff]
      %v211 = vld [vmem:[%s1 + $0x8] sm:$0xff]
      %v212 = vld [vmem:[%s1 + $0x10] sm:$0xff]
      %v213 = vld [vmem:[%s1 + $0x18] sm:$0xff]
      %v214 = vld [vmem:[%s1 + $0x20] sm:$0xff]
      %v215 = vld [vmem:[%s1 + $0x28] sm:$0xff]
      %v216 = vld [vmem:[%s1 + $0x30] sm:$0xff]
      %v217 = vld [vmem:[%s1 + $0x38] sm:$0xff]
      %v218 = vld [vmem:[%s1 + $0x40] sm:$0xff]
      %v219 = vld [vmem:[%s1 + $0x48] sm:$0xff]
      %v220 = vld [vmem:[%s1 + $0x50] sm:$0xff]
      %v221 = vld [vmem:[%s1 + $0x58] sm:$0xff]
      %v222 = vld [vmem:[%s1 + $0x60] sm:$0xff]
      %v223 = vld [vmem:[%s1 + $0x68] sm:$0xff]
      %v224 = vld [vmem:[%s1 + $0x70] sm:$0xff]
      %v225 = vld [vmem:[%s1 + $0x78] sm:$0xff]
      %v226 = vpack.c.bf16 %v211, %v210
      %v227 = vpack.c.bf16 %v213, %v212
      %v228 = vpack.c.bf16 %v215, %v214
      %v229 = vpack.c.bf16 %v217, %v216
      %v230 = vpack.c.bf16 %v219, %v218
      %v231 = vpack.c.bf16 %v221, %v220
      %v232 = vpack.c.bf16 %v223, %v222
      %v233 = vpack.c.bf16 %v225, %v224
      %v234 = vld [vmem:[%s2] sm:$0x1]
      %v236 = vlaneseq
      %v237 = vshrl.u32 %v236, 7
      %v238 = vsub.s32 0, %v237
      %v239 = vrot.slane %v234, %v238
      %v249 = vunpack.c.l.b16 %v202
      %v250 = vunpack.c.l.b16 %v203
      %v251 = vunpack.c.l.b16 %v204
      %v252 = vunpack.c.l.b16 %v205
      %v253 = vunpack.c.l.b16 %v206
      %v254 = vunpack.c.l.b16 %v207
      %v255 = vunpack.c.l.b16 %v208
      %v256 = vunpack.c.l.b16 %v209
      %v257 = vpack.c.b16 %v250, %v249
      %v258 = vpack.c.b16 %v252, %v251
      %v259 = vpack.c.b16 %v254, %v253
      %v260 = vpack.c.b16 %v256, %v255
      %265 = vmatprep.subr.bf16.mxu0 0
      %266 = vmatpush1.bf16.msra.mxu0 %v226
      %267 = vmatprep.subr.bf16.mxu0 0
      %268 = vmatpush1.bf16.msra.mxu0 %v227
      %269 = vmatprep.subr.bf16.mxu0 0
      %270 = vmatpush1.bf16.msra.mxu0 %v228
      %271 = vmatprep.subr.bf16.mxu0 0
      %272 = vmatpush1.bf16.msra.mxu0 %v229
      %273 = vmatprep.subr.bf16.mxu0 0
      %274 = vmatpush1.bf16.msra.mxu0 %v230
      %275 = vmatprep.subr.bf16.mxu0 0
      %276 = vmatpush1.bf16.msra.mxu0 %v231
      %277 = vmatprep.subr.bf16.mxu0 0
      %278 = vmatpush1.bf16.msra.mxu0 %v232
      %279 = vmatprep.subr.bf16.mxu0 0
      %280 = vmatpush1.bf16.msra.mxu0 %v233
      %281 = vmatprep.subr.bf16.mxu0 0
      %282 = vmatpush1.bf16.msra.mxu0 0
      %283 = vmatprep.subr.bf16.mxu0 0
      %284 = vmatpush1.bf16.msra.mxu0 0
      %285 = vmatprep.subr.bf16.mxu0 0
      %286 = vmatpush1.bf16.msra.mxu0 0
      %287 = vmatprep.subr.bf16.mxu0 0
      %288 = vmatpush1.bf16.msra.mxu0 0
      %289 = vmatprep.subr.bf16.mxu0 0
      %290 = vmatpush1.bf16.msra.mxu0 0
      %291 = vmatprep.subr.bf16.mxu0 0
      %292 = vmatpush1.bf16.msra.mxu0 0
      %293 = vmatprep.subr.bf16.mxu0 0
      %294 = vmatpush1.bf16.msra.mxu0 0
      %295 = vmatprep.subr.bf16.mxu0 0
      %296 = vmatpush1.bf16.msra.mxu0 0
      %297 = vmatprep.mubr.bf16.mxu0 0
      %298 = vmatmul.mubr.bf16.gmra.mrb[0].mxu0 %v257
      %v299 = vpop.f32.mrb[0].mxu0
      %v300 = vadd.f32 %v239, %v299
      %v301 = vpop.f32.mrb[0].mxu0
      %v302 = vpop.f32.mrb[0].mxu0
      %v303 = vadd.f32 %v239, %v302
      %v304 = vpop.f32.mrb[0].mxu0
      %305 = vmatprep.mubr.bf16.mxu0 0
      %306 = vmatmul.mubr.bf16.gmra.mrb[0].mxu0 %v258
      %v307 = vpop.f32.mrb[0].mxu0
      %v308 = vadd.f32 %v239, %v307
      %v309 = vpop.f32.mrb[0].mxu0
      %v310 = vpop.f32.mrb[0].mxu0
      %v311 = vadd.f32 %v239, %v310
      %v312 = vpop.f32.mrb[0].mxu0
      %313 = vmatprep.mubr.bf16.mxu0 0
      %314 = vmatmul.mubr.bf16.gmra.mrb[0].mxu0 %v259
      %v315 = vpop.f32.mrb[0].mxu0
      %v316 = vadd.f32 %v239, %v315
      %v317 = vpop.f32.mrb[0].mxu0
      %v318 = vpop.f32.mrb[0].mxu0
      %v319 = vadd.f32 %v239, %v318
      %v320 = vpop.f32.mrb[0].mxu0
      %321 = vmatprep.mubr.bf16.mxu0 0
      %322 = vmatmul.mubr.bf16.gmra.mrb[0].mxu0 %v260
      %v323 = vpop.f32.mrb[0].mxu0
      %v324 = vadd.f32 %v239, %v323
      %v325 = vpop.f32.mrb[0].mxu0
      %v326 = vpop.f32.mrb[0].mxu0
      %v327 = vadd.f32 %v239, %v326
      %v328 = vpop.f32.mrb[0].mxu0
      %329 = vdwg.mxu0
      %v330 = vmax.f32 %v300, 0.0
      %v331 = vmax.f32 %v303, 0.0
      %v332 = vmax.f32 %v308, 0.0
      %v333 = vmax.f32 %v311, 0.0
      %v334 = vmax.f32 %v316, 0.0
      %v335 = vmax.f32 %v319, 0.0
      %v336 = vmax.f32 %v324, 0.0
      %v337 = vmax.f32 %v327, 0.0
      %v338 = vpack.c.bf16 %v331, %v330
      %v339 = vpack.c.bf16 %v333, %v332
      %v340 = vpack.c.bf16 %v335, %v334
      %v341 = vpack.c.bf16 %v337, %v336
      %v342 = vld [vmem:[%s3] sm:$0xf]
      %v343 = vld [vmem:[%s3 + $0x4] sm:$0xf]
      %v344 = vld [vmem:[%s3 + $0x8] sm:$0xf]
      %v345 = vld [vmem:[%s3 + $0xc] sm:$0xf]
      %v346 = vld [vmem:[%s3 + $0x10] sm:$0xf]
      %v347 = vld [vmem:[%s3 + $0x14] sm:$0xf]
      %v348 = vld [vmem:[%s3 + $0x18] sm:$0xf]
      %v349 = vld [vmem:[%s3 + $0x1c] sm:$0xf]
      %v350 = vld [vmem:[%s3 + $0x20] sm:$0xf]
      %v351 = vld [vmem:[%s3 + $0x24] sm:$0xf]
      %v352 = vld [vmem:[%s3 + $0x28] sm:$0xf]
      %v353 = vld [vmem:[%s3 + $0x2c] sm:$0xf]
      %v354 = vld [vmem:[%s3 + $0x30] sm:$0xf]
      %v355 = vld [vmem:[%s3 + $0x34] sm:$0xf]
      %v356 = vld [vmem:[%s3 + $0x38] sm:$0xf]
      %v357 = vld [vmem:[%s3 + $0x3c] sm:$0xf]
      %v374 = vunpack.c.l.b16 %v342
      %v375 = vunpack.c.l.b16 %v343
      %v376 = vunpack.c.l.b16 %v344
      %v377 = vunpack.c.l.b16 %v345
      %v378 = vunpack.c.l.b16 %v346
      %v379 = vunpack.c.l.b16 %v347
      %v380 = vunpack.c.l.b16 %v348
      %v381 = vunpack.c.l.b16 %v349
      %v382 = vunpack.c.l.b16 %v350
      %v383 = vunpack.c.l.b16 %v351
      %v384 = vunpack.c.l.b16 %v352
      %v385 = vunpack.c.l.b16 %v353
      %v386 = vunpack.c.l.b16 %v354
      %v387 = vunpack.c.l.b16 %v355
      %v388 = vunpack.c.l.b16 %v356
      %v389 = vunpack.c.l.b16 %v357
      %v390 = vpack.c.b16 %v375, %v374
      %v391 = vpack.c.b16 %v377, %v376
      %v392 = vpack.c.b16 %v379, %v378
      %v393 = vpack.c.b16 %v381, %v380
      %v394 = vpack.c.b16 %v383, %v382
      %v395 = vpack.c.b16 %v385, %v384
      %v396 = vpack.c.b16 %v387, %v386
      %v397 = vpack.c.b16 %v389, %v388
      %406 = vmatprep.subr.bf16.mxu0 0
      %407 = vmatpush1.bf16.msra.mxu0 %v390
      %408 = vmatprep.subr.bf16.mxu0 0
      %409 = vmatpush1.bf16.msra.mxu0 %v391
      %410 = vmatprep.subr.bf16.mxu0 0
      %411 = vmatpush1.bf16.msra.mxu0 %v392
      %412 = vmatprep.subr.bf16.mxu0 0
      %413 = vmatpush1.bf16.msra.mxu0 %v393
      %414 = vmatprep.subr.bf16.mxu0 0
      %415 = vmatpush1.bf16.msra.mxu0 %v394
      %416 = vmatprep.subr.bf16.mxu0 0
      %417 = vmatpush1.bf16.msra.mxu0 %v395
      %418 = vmatprep.subr.bf16.mxu0 0
      %419 = vmatpush1.bf16.msra.mxu0 %v396
      %420 = vmatprep.subr.bf16.mxu0 0
      %421 = vmatpush1.bf16.msra.mxu0 %v397
      %422 = vmatprep.subr.bf16.mxu0 0
      %423 = vmatpush1.bf16.msra.mxu0 0
      %424 = vmatprep.subr.bf16.mxu0 0
      %425 = vmatpush1.bf16.msra.mxu0 0
      %426 = vmatprep.subr.bf16.mxu0 0
      %427 = vmatpush1.bf16.msra.mxu0 0
      %428 = vmatprep.subr.bf16.mxu0 0
      %429 = vmatpush1.bf16.msra.mxu0 0
      %430 = vmatprep.subr.bf16.mxu0 0
      %431 = vmatpush1.bf16.msra.mxu0 0
      %432 = vmatprep.subr.bf16.mxu0 0
      %433 = vmatpush1.bf16.msra.mxu0 0
      %434 = vmatprep.subr.bf16.mxu0 0
      %435 = vmatpush1.bf16.msra.mxu0 0
      %436 = vmatprep.subr.bf16.mxu0 0
      %437 = vmatpush1.bf16.msra.mxu0 0
      %438 = vmatprep.mubr.bf16.mxu0 0
      %439 = vmatmul.mubr.bf16.gmra.mrb[0].mxu0 %v338
      %v440 = vpop.f32.mrb[0].mxu0
      %v441 = vadd.f32 0.0, %v440
      %v442 = vpop.f32.mrb[0].mxu0
      %v443 = vpop.f32.mrb[0].mxu0
      %v444 = vadd.f32 0.0, %v443
      %v445 = vpop.f32.mrb[0].mxu0
      %446 = vmatprep.mubr.bf16.mxu0 0
      %447 = vmatmul.mubr.bf16.gmra.mrb[0].mxu0 %v339
      %v448 = vpop.f32.mrb[0].mxu0
      %v449 = vadd.f32 0.0, %v448
      %v450 = vpop.f32.mrb[0].mxu0
      %v451 = vpop.f32.mrb[0].mxu0
      %v452 = vadd.f32 0.0, %v451
      %v453 = vpop.f32.mrb[0].mxu0
      %454 = vmatprep.mubr.bf16.mxu0 0
      %455 = vmatmul.mubr.bf16.gmra.mrb[0].mxu0 %v340
      %v456 = vpop.f32.mrb[0].mxu0
      %v457 = vadd.f32 0.0, %v456
      %v458 = vpop.f32.mrb[0].mxu0
      %v459 = vpop.f32.mrb[0].mxu0
      %v460 = vadd.f32 0.0, %v459
      %v461 = vpop.f32.mrb[0].mxu0
      %462 = vmatprep.mubr.bf16.mxu0 0
      %463 = vmatmul.mubr.bf16.gmra.mrb[0].mxu0 %v341
      %v464 = vpop.f32.mrb[0].mxu0
      %v465 = vadd.f32 0.0, %v464
      %v466 = vpop.f32.mrb[0].mxu0
      %v467 = vpop.f32.mrb[0].mxu0
      %v468 = vadd.f32 0.0, %v467
      %v469 = vpop.f32.mrb[0].mxu0
      %470 = vdwg.mxu0
      %471 = vst [vmem:[%s199] sm:$0xff] %v441
      %472 = vst [vmem:[%s199 + $0x8] sm:$0xff] %v444
      %473 = vst [vmem:[%s199 + $0x10] sm:$0xff] %v449
      %474 = vst [vmem:[%s199 + $0x18] sm:$0xff] %v452
      %475 = vst [vmem:[%s199 + $0x20] sm:$0xff] %v457
      %476 = vst [vmem:[%s199 + $0x28] sm:$0xff] %v460
      %477 = vst [vmem:[%s199 + $0x30] sm:$0xff] %v465
      %478 = vst [vmem:[%s199 + $0x38] sm:$0xff] %v468
      %s479 = smul.u32 8, %s15
      %p480 = scmp.lt.s32.totalorder %s479, 15
      %s481 = scalar_select %p480, %s479, 15
      %s482 = smul.addr %s481, 8
      %s483 = scalar_lea.vmem %s4, %s482
      // Predicated region
      $region37: #{hitsgnn_forward.6} parent=35 // pred_check
        %p484 = pneg %p122
      $region38: #{hitsgnn_forward.6} parent=35 // pred_check_branch
        %486 = sbr.rel (%p484) target = $region40
      $region39: #{hitsgnn_forward.6} parent=35 // pred_region
        %s487 = smul.u32 8, %s15
      $region40: #{hitsgnn_forward.6} parent=35 // pred_fallthru
        _
    $region36: #{hitsgnn_forward.6} parent=5 // pred_fallthru
      _
    %p488 = scmp.le.s32.totalorder 2, %s10
    // Predicated region
    $region41: #{hitsgnn_forward.6} parent=5 // pred_check
      %p489 = pneg %p488
    $region42: #{hitsgnn_forward.6} parent=5 // pred_check_branch
      %491 = sbr.rel (%p489) target = $region44
    $region43: #{hitsgnn_forward.6} parent=5 // pred_region
      %s492 = ssub.s32 %s10, 2
      // Predicated region
      $region45: #{hitsgnn_forward.6} parent=43 // pred_check
        %p493 = pneg %p128
      $region46: #{hitsgnn_forward.6} parent=43 // pred_check_branch
        %495 = sbr.rel (%p493) target = $region48
      $region47: #{hitsgnn_forward.6} parent=43 // pred_region
        %s496 = smul.u32 8, %s16
        %p497 = scmp.lt.s32.totalorder %s496, 15
        %s498 = scalar_select %p497, %s496, 15
        %s499 = smul.addr %s498, 8
        %s500 = scalar_lea.vmem %s4, %s499
      $region48: #{hitsgnn_forward.6} parent=43 // pred_fallthru
        _
    $region44: #{hitsgnn_forward.6} parent=5 // pred_fallthru
      _
  $region6: #{hitsgnn_forward.6} parent=0 // loop_footer
    %s14 = sadd.s32 1, %s10
  $region7: #{hitsgnn_forward.6} parent=0 // loop_footer_branch
    %9 = sbr.rel target = $region3
  $region8: #{hitsgnn_forward.6} parent=0 // loop_exit
    _

// kernel: hitsgnn_forward.4
$region0: #{hitsgnn_forward.4}
  #allocation0 [shape = 'u32[]', space=smem, size = 0x4, offset = 0x4, fixed_abs, tag = 'smem constant byte address 0x4 - core index']
  #allocation1 [shape = 'u32[144,128]{1,0:T(1,128)}', space=vmem, size = 0x12000, scoped, tag = 'internal scratch']
  %s0 = inlined_call_operand.vmem [shape: bf16[128,128], index: 0, kind: input, shape index: {}]
  %s1 = inlined_call_operand.vmem [shape: bf16[128,128], index: 1, kind: input, shape index: {}]
  %s2 = inlined_call_operand.vmem [shape: f32[128,128], index: 2, kind: input, shape index: {}]
  %s3 = inlined_call_operand.vmem [shape: f32[128,128], index: 3, kind: output, shape index: {0}]
  %s4 = inlined_call_operand.vmem [shape: f32[128,128], index: 4, kind: output, shape index: {1}]
  %5 = xla_tuple %s3, %s4
  %s6 = sld [smem:[#allocation0]]
  $region53: #{hitsgnn_forward.4} parent=0
    _
  %s8 = ssub.s32 1, %s6
  %s9 = scalar_select 0, %s8, %s6
  loop: start=0, step=1, limit=4
  $region2: #{hitsgnn_forward.4} parent=0 // loop_pre_header
    _
  $region3: #{hitsgnn_forward.4} parent=0 // loop_header
    %s11 = sphi 0, %s15
    %p12 = scmp.ge.s32.totalorder %s11, 4
    %s21 = sphi 0, %s23
    %s24 = sphi 0, %s21
    %s25 = sphi 0, %s24
    %s41 = sphi 0, %s25
    %s47 = sphi 0, %s49
    %s50 = sphi 0, %s47
    %s51 = sphi 0, %s50
    %s67 = sphi 0, %s51
    %s71 = sphi 0, %s71
    %s73 = sphi 0, %s71
    %s74 = sphi 0, %s73
    %s88 = sphi 0, %s74
    %s94 = sphi 0, %s96
    %s97 = sphi 0, %s94
    %s98 = sphi 0, %s97
    %s114 = sphi 0, %s98
    %s120 = sphi 0, %s122
    %s123 = sphi 0, %s120
    %s124 = sphi 0, %s123
    %s140 = sphi 0, %s124
  $region4: #{hitsgnn_forward.4} parent=0 // loop_header_branch
    %14 = sbr.rel (%p12) target = $region8
  $region5: #{hitsgnn_forward.4} parent=0 // loop_body
    %s16 = ssub.s32 %s11, 1
    %s17 = ssub.s32 %s11, 2
    %s18 = sadd.s32 %s11, 1
    %s19 = ssub.s32 %s11, %s18
    %p20 = scmp.eq.s32.totalorder %s19, 0
    %s22 = sadd.s32 %s21, 1
    %s23 = scalar_select %p20, %s21, %s22
    %p26 = pneg %p20
    %p27 = scmp.eq.s32.totalorder %s11, 1
    %p28 = por %p26, %p27
    %p29 = scmp.ne.s32.totalorder %s21, %s24
    %p30 = scmp.eq.s32.totalorder %s11, 0
    %p31 = por %p29, %p30
    %p32 = scmp.ne.s32.totalorder %s21, %s24
    %p33 = scmp.eq.s32.totalorder %s16, 1
    %p34 = por %p32, %p33
    %p35 = scmp.ne.s32.totalorder %s24, %s25
    %p36 = scmp.eq.s32.totalorder %s16, 0
    %p37 = por %p35, %p36
    %p38 = scmp.ne.s32.totalorder %s24, %s25
    %p39 = scmp.eq.s32.totalorder %s17, 1
    %p40 = por %p38, %p39
    %p42 = scmp.ne.s32.totalorder %s25, %s41
    %p43 = scmp.eq.s32.totalorder %s17, 0
    %p44 = por %p42, %p43
    %s45 = ssub.s32 %s11, %s18
    %p46 = scmp.eq.s32.totalorder %s45, 0
    %s48 = sadd.s32 %s47, 1
    %s49 = scalar_select %p46, %s47, %s48
    %p52 = pneg %p46
    %p53 = scmp.eq.s32.totalorder %s11, 1
    %p54 = por %p52, %p53
    %p55 = scmp.ne.s32.totalorder %s47, %s50
    %p56 = scmp.eq.s32.totalorder %s11, 0
    %p57 = por %p55, %p56
    %p58 = scmp.ne.s32.totalorder %s47, %s50
    %p59 = scmp.eq.s32.totalorder %s16, 1
    %p60 = por %p58, %p59
    %p61 = scmp.ne.s32.totalorder %s50, %s51
    %p62 = scmp.eq.s32.totalorder %s16, 0
    %p63 = por %p61, %p62
    %p64 = scmp.ne.s32.totalorder %s50, %s51
    %p65 = scmp.eq.s32.totalorder %s17, 1
    %p66 = por %p64, %p65
    %p68 = scmp.ne.s32.totalorder %s51, %s67
    %p69 = scmp.eq.s32.totalorder %s17, 0
    %p70 = por %p68, %p69
    %s72 = sadd.s32 %s71, 1
    %p75 = scmp.eq.s32.totalorder %s11, 1
    %p76 = scmp.ne.s32.totalorder %s71, %s73
    %p77 = scmp.eq.s32.totalorder %s11, 0
    %p78 = por %p76, %p77
    %p79 = scmp.ne.s32.totalorder %s71, %s73
    %p80 = scmp.eq.s32.totalorder %s16, 1
    %p81 = por %p79, %p80
    %p82 = scmp.ne.s32.totalorder %s73, %s74
    %p83 = scmp.eq.s32.totalorder %s16, 0
    %p84 = por %p82, %p83
    %p85 = scmp.ne.s32.totalorder %s73, %s74
    %p86 = scmp.eq.s32.totalorder %s17, 1
    %p87 = por %p85, %p86
    %p89 = scmp.ne.s32.totalorder %s74, %s88
    %p90 = scmp.eq.s32.totalorder %s17, 0
    %p91 = por %p89, %p90
    %s92 = ssub.s32 %s11, %s18
    %p93 = scmp.eq.s32.totalorder %s92, 0
    %s95 = sadd.s32 %s94, 1
    %s96 = scalar_select %p93, %s94, %s95
    %p99 = pneg %p93
    %p100 = scmp.eq.s32.totalorder %s11, 1
    %p101 = por %p99, %p100
    %p102 = scmp.ne.s32.totalorder %s94, %s97
    %p103 = scmp.eq.s32.totalorder %s11, 0
    %p104 = por %p102, %p103
    %p105 = scmp.ne.s32.totalorder %s94, %s97
    %p106 = scmp.eq.s32.totalorder %s16, 1
    %p107 = por %p105, %p106
    %p108 = scmp.ne.s32.totalorder %s97, %s98
    %p109 = scmp.eq.s32.totalorder %s16, 0
    %p110 = por %p108, %p109
    %p111 = scmp.ne.s32.totalorder %s97, %s98
    %p112 = scmp.eq.s32.totalorder %s17, 1
    %p113 = por %p111, %p112
    %p115 = scmp.ne.s32.totalorder %s98, %s114
    %p116 = scmp.eq.s32.totalorder %s17, 0
    %p117 = por %p115, %p116
    %s118 = ssub.s32 %s11, %s18
    %p119 = scmp.eq.s32.totalorder %s118, 0
    %s121 = sadd.s32 %s120, 1
    %s122 = scalar_select %p119, %s120, %s121
    %p125 = pneg %p119
    %p126 = scmp.eq.s32.totalorder %s11, 1
    %p127 = por %p125, %p126
    %p128 = scmp.ne.s32.totalorder %s120, %s123
    %p129 = scmp.eq.s32.totalorder %s11, 0
    %p130 = por %p128, %p129
    %p131 = scmp.ne.s32.totalorder %s120, %s123
    %p132 = scmp.eq.s32.totalorder %s16, 1
    %p133 = por %p131, %p132
    %p134 = scmp.ne.s32.totalorder %s123, %s124
    %p135 = scmp.eq.s32.totalorder %s16, 0
    %p136 = por %p134, %p135
    %p137 = scmp.ne.s32.totalorder %s123, %s124
    %p138 = scmp.eq.s32.totalorder %s17, 1
    %p139 = por %p137, %p138
    %p141 = scmp.ne.s32.totalorder %s124, %s140
    %p142 = scmp.eq.s32.totalorder %s17, 0
    %p143 = por %p141, %p142
    %p144 = scmp.le.s32.totalorder 1, %s11
    %p145 = scmp.lt.s32.totalorder %s11, 3
    %p146 = pnand %p144, %p145
    %p147 = pneg %p146
    // Predicated region
    $region9: #{hitsgnn_forward.4} parent=5 // pred_check
      _
    $region10: #{hitsgnn_forward.4} parent=5 // pred_check_branch
      %149 = sbr.rel (%p146) target = $region12
    $region11: #{hitsgnn_forward.4} parent=5 // pred_region
      %s150 = ssub.s32 %s11, 1
      // Predicated region
      $region13: #{hitsgnn_forward.4} parent=11 // pred_check
        %p151 = pneg %p84
      $region14: #{hitsgnn_forward.4} parent=11 // pred_check_branch
        %153 = sbr.rel (%p151) target = $region16
      $region15: #{hitsgnn_forward.4} parent=11 // pred_region
        _
      $region16: #{hitsgnn_forward.4} parent=11 // pred_fallthru
        _
    $region12: #{hitsgnn_forward.4} parent=5 // pred_fallthru
      _
    %p154 = scmp.lt.s32.totalorder %s11, 2
    // Predicated region
    $region17: #{hitsgnn_forward.4} parent=5 // pred_check
      %p155 = pneg %p154
    $region18: #{hitsgnn_forward.4} parent=5 // pred_check_branch
      %157 = sbr.rel (%p155) target = $region20
    $region19: #{hitsgnn_forward.4} parent=5 // pred_region
      // Predicated region
      $region21: #{hitsgnn_forward.4} parent=19 // pred_check
        %p158 = pneg %p31
      $region22: #{hitsgnn_forward.4} parent=19 // pred_check_branch
        %160 = sbr.rel (%p158) target = $region24
      $region23: #{hitsgnn_forward.4} parent=19 // pred_region
        %s161 = smul.u32 8, %s11
        %p162 = scmp.lt.s32.totalorder %s161, 15
        %s163 = scalar_select %p162, %s161, 15
        %s164 = smul.addr %s163, 4
        %s165 = scalar_lea.vmem %s0, %s164
        %s166 = smul.u32 8, %s11
      $region24: #{hitsgnn_forward.4} parent=19 // pred_fallthru
        _
      // Predicated region
      $region25: #{hitsgnn_forward.4} parent=19 // pred_check
        %p167 = pneg %p57
      $region26: #{hitsgnn_forward.4} parent=19 // pred_check_branch
        %169 = sbr.rel (%p167) target = $region28
      $region27: #{hitsgnn_forward.4} parent=19 // pred_region
        %s170 = smul.u32 8, %s11
        %p171 = scmp.lt.s32.totalorder %s170, 15
        %s172 = scalar_select %p171, %s170, 15
        %s173 = smul.addr %s172, 4
        %s174 = scalar_lea.vmem %s1, %s173
        %s175 = smul.u32 8, %s11
      $region28: #{hitsgnn_forward.4} parent=19 // pred_fallthru
        _
    $region20: #{hitsgnn_forward.4} parent=5 // pred_fallthru
      _
    %p176 = scmp.le.s32.totalorder 1, %s11
    %p177 = scmp.lt.s32.totalorder %s11, 3
    %p178 = pnand %p176, %p177
    %p179 = pneg %p178
    // Predicated region
    $region29: #{hitsgnn_forward.4} parent=5 // pred_check
      _
    $region30: #{hitsgnn_forward.4} parent=5 // pred_check_branch
      %181 = sbr.rel (%p178) target = $region32
    $region31: #{hitsgnn_forward.4} parent=5 // pred_region
      %s182 = ssub.s32 %s11, 1
      %s183 = smul.u32 8, %s16
      %p184 = scmp.lt.s32.totalorder %s183, 15
      %s185 = scalar_select %p184, %s183, 15
      %s186 = smul.addr %s185, 4
      %s187 = scalar_lea.vmem %s0, %s186
      %p188 = pneg %p37
      %p189 = pneg %p34
      %s190 = smul.u32 8, %s16
      %p191 = scmp.lt.s32.totalorder %s190, 15
      %s192 = scalar_select %p191, %s190, 15
      %s193 = smul.addr %s192, 4
      %s194 = scalar_lea.vmem %s1, %s193
      %p195 = pneg %p63
      %p196 = pneg %p60
      %p197 = pneg %p84
      %p198 = pneg %p81
      %p199 = pneg %p110
      %p200 = pneg %p107
      %s201 = smul.u32 8, %s16
      %p202 = scmp.lt.s32.totalorder %s201, 15
      %s203 = scalar_select %p202, %s201, 15
      %s204 = smul.addr %s203, 8
      %s205 = scalar_lea.vmem %s3, %s204
      %p206 = pneg %p136
      %p207 = pneg %p133
      %s208 = smul.u32 8, %s16
      %p209 = scmp.lt.s32.totalorder %s208, 15
      %s210 = scalar_select %p209, %s208, 15
      %s211 = smul.addr %s210, 8
      %s212 = scalar_lea.vmem %s4, %s211
      %s213 = smul.u32 8, %s16
      %p214 = scmp.lt.s32.totalorder %s213, 15
      %s215 = scalar_select %p214, %s213, 15
      %s216 = smul.addr %s215, 4
      %s217 = scalar_lea.vmem %s0, %s216
      %s218 = smul.u32 8, %s16
      %s219 = smul.u32 8, %s16
      %p220 = scmp.lt.s32.totalorder %s219, 15
      %s221 = scalar_select %p220, %s219, 15
      %s222 = smul.addr %s221, 4
      %s223 = scalar_lea.vmem %s1, %s222
      %s224 = smul.u32 8, %s16
      %s225 = smul.u32 8, %s16
      %p226 = scmp.lt.s32.totalorder %s225, 15
      %s227 = scalar_select %p226, %s225, 15
      %s228 = smul.addr %s227, 8
      %s229 = scalar_lea.vmem %s3, %s228
      %s230 = smul.u32 8, %s16
      %s231 = smul.u32 8, %s16
      %p232 = scmp.lt.s32.totalorder %s231, 15
      %s233 = scalar_select %p232, %s231, 15
      %s234 = smul.addr %s233, 8
      %s235 = scalar_lea.vmem %s4, %s234
      %s236 = smul.u32 8, %s16
      %v238 = vld [vmem:[%s2] sm:$0xff]
      %v239 = vld [vmem:[%s2 + $0x8] sm:$0xff]
      %v240 = vld [vmem:[%s2 + $0x10] sm:$0xff]
      %v241 = vld [vmem:[%s2 + $0x18] sm:$0xff]
      %v242 = vld [vmem:[%s2 + $0x20] sm:$0xff]
      %v243 = vld [vmem:[%s2 + $0x28] sm:$0xff]
      %v244 = vld [vmem:[%s2 + $0x30] sm:$0xff]
      %v245 = vld [vmem:[%s2 + $0x38] sm:$0xff]
      %v246 = vld [vmem:[%s2 + $0x40] sm:$0xff]
      %v247 = vld [vmem:[%s2 + $0x48] sm:$0xff]
      %v248 = vld [vmem:[%s2 + $0x50] sm:$0xff]
      %v249 = vld [vmem:[%s2 + $0x58] sm:$0xff]
      %v250 = vld [vmem:[%s2 + $0x60] sm:$0xff]
      %v251 = vld [vmem:[%s2 + $0x68] sm:$0xff]
      %v252 = vld [vmem:[%s2 + $0x70] sm:$0xff]
      %v253 = vld [vmem:[%s2 + $0x78] sm:$0xff]
      %v254 = vpack.c.bf16 %v239, %v238
      %v255 = vpack.c.bf16 %v241, %v240
      %v256 = vpack.c.bf16 %v243, %v242
      %v257 = vpack.c.bf16 %v245, %v244
      %v258 = vpack.c.bf16 %v247, %v246
      %v259 = vpack.c.bf16 %v249, %v248
      %v260 = vpack.c.bf16 %v251, %v250
      %v261 = vpack.c.bf16 %v253, %v252
      %v262 = vld [vmem:[%s217] sm:$0xf]
      %v263 = vld [vmem:[%s217 + $0x4] sm:$0xf]
      %v264 = vld [vmem:[%s217 + $0x8] sm:$0xf]
      %v265 = vld [vmem:[%s217 + $0xc] sm:$0xf]
      %v266 = vld [vmem:[%s217 + $0x10] sm:$0xf]
      %v267 = vld [vmem:[%s217 + $0x14] sm:$0xf]
      %v268 = vld [vmem:[%s217 + $0x18] sm:$0xf]
      %v269 = vld [vmem:[%s217 + $0x1c] sm:$0xf]
      %v278 = vunpack.c.l.b16 %v262
      %v279 = vunpack.c.l.b16 %v263
      %v280 = vunpack.c.l.b16 %v264
      %v281 = vunpack.c.l.b16 %v265
      %v282 = vunpack.c.l.b16 %v266
      %v283 = vunpack.c.l.b16 %v267
      %v284 = vunpack.c.l.b16 %v268
      %v285 = vunpack.c.l.b16 %v269
      %v286 = vpack.c.b16 %v279, %v278
      %v287 = vpack.c.b16 %v281, %v280
      %v288 = vpack.c.b16 %v283, %v282
      %v289 = vpack.c.b16 %v285, %v284
      %294 = vmatprep.subr.bf16.mxu0 0
      %295 = vmatpush1.bf16.msra.mxu0 %v254
      %296 = vmatprep.subr.bf16.mxu0 0
      %297 = vmatpush1.bf16.msra.mxu0 %v255
      %298 = vmatprep.subr.bf16.mxu0 0
      %299 = vmatpush1.bf16.msra.mxu0 %v256
      %300 = vmatprep.subr.bf16.mxu0 0
      %301 = vmatpush1.bf16.msra.mxu0 %v257
      %302 = vmatprep.subr.bf16.mxu0 0
      %303 = vmatpush1.bf16.msra.mxu0 %v258
      %304 = vmatprep.subr.bf16.mxu0 0
      %305 = vmatpush1.bf16.msra.mxu0 %v259
      %306 = vmatprep.subr.bf16.mxu0 0
      %307 = vmatpush1.bf16.msra.mxu0 %v260
      %308 = vmatprep.subr.bf16.mxu0 0
      %309 = vmatpush1.bf16.msra.mxu0 %v261
      %310 = vmatprep.subr.bf16.mxu0 0
      %311 = vmatpush1.bf16.msra.mxu0 0
      %312 = vmatprep.subr.bf16.mxu0 0
      %313 = vmatpush1.bf16.msra.mxu0 0
      %314 = vmatprep.subr.bf16.mxu0 0
      %315 = vmatpush1.bf16.msra.mxu0 0
      %316 = vmatprep.subr.bf16.mxu0 0
      %317 = vmatpush1.bf16.msra.mxu0 0
      %318 = vmatprep.subr.bf16.mxu0 0
      %319 = vmatpush1.bf16.msra.mxu0 0
      %320 = vmatprep.subr.bf16.mxu0 0
      %321 = vmatpush1.bf16.msra.mxu0 0
      %322 = vmatprep.subr.bf16.mxu0 0
      %323 = vmatpush1.bf16.msra.mxu0 0
      %324 = vmatprep.subr.bf16.mxu0 0
      %325 = vmatpush1.bf16.msra.mxu0 0
      %326 = vmatprep.mubr.bf16.mxu0 0
      %327 = vmatmul.mubr.bf16.gmra.mrb[0].mxu0 %v286
      %v328 = vpop.f32.mrb[0].mxu0
      %v329 = vadd.f32 0.0, %v328
      %v330 = vpop.f32.mrb[0].mxu0
      %v331 = vpop.f32.mrb[0].mxu0
      %v332 = vadd.f32 0.0, %v331
      %v333 = vpop.f32.mrb[0].mxu0
      %334 = vmatprep.mubr.bf16.mxu0 0
      %335 = vmatmul.mubr.bf16.gmra.mrb[0].mxu0 %v287
      %v336 = vpop.f32.mrb[0].mxu0
      %v337 = vadd.f32 0.0, %v336
      %v338 = vpop.f32.mrb[0].mxu0
      %v339 = vpop.f32.mrb[0].mxu0
      %v340 = vadd.f32 0.0, %v339
      %v341 = vpop.f32.mrb[0].mxu0
      %342 = vmatprep.mubr.bf16.mxu0 0
      %343 = vmatmul.mubr.bf16.gmra.mrb[0].mxu0 %v288
      %v344 = vpop.f32.mrb[0].mxu0
      %v345 = vadd.f32 0.0, %v344
      %v346 = vpop.f32.mrb[0].mxu0
      %v347 = vpop.f32.mrb[0].mxu0
      %v348 = vadd.f32 0.0, %v347
      %v349 = vpop.f32.mrb[0].mxu0
      %350 = vmatprep.mubr.bf16.mxu0 0
      %351 = vmatmul.mubr.bf16.gmra.mrb[0].mxu0 %v289
      %v352 = vpop.f32.mrb[0].mxu0
      %v353 = vadd.f32 0.0, %v352
      %v354 = vpop.f32.mrb[0].mxu0
      %v355 = vpop.f32.mrb[0].mxu0
      %v356 = vadd.f32 0.0, %v355
      %v357 = vpop.f32.mrb[0].mxu0
      %358 = vdwg.mxu0
      %359 = vst [vmem:[%s229] sm:$0xff] %v329
      %360 = vst [vmem:[%s229 + $0x8] sm:$0xff] %v332
      %361 = vst [vmem:[%s229 + $0x10] sm:$0xff] %v337
      %362 = vst [vmem:[%s229 + $0x18] sm:$0xff] %v340
      %363 = vst [vmem:[%s229 + $0x20] sm:$0xff] %v345
      %364 = vst [vmem:[%s229 + $0x28] sm:$0xff] %v348
      %365 = vst [vmem:[%s229 + $0x30] sm:$0xff] %v353
      %366 = vst [vmem:[%s229 + $0x38] sm:$0xff] %v356
      %v367 = vld [vmem:[%s223] sm:$0xf]
      %v368 = vld [vmem:[%s223 + $0x4] sm:$0xf]
      %v369 = vld [vmem:[%s223 + $0x8] sm:$0xf]
      %v370 = vld [vmem:[%s223 + $0xc] sm:$0xf]
      %v371 = vld [vmem:[%s223 + $0x10] sm:$0xf]
      %v372 = vld [vmem:[%s223 + $0x14] sm:$0xf]
      %v373 = vld [vmem:[%s223 + $0x18] sm:$0xf]
      %v374 = vld [vmem:[%s223 + $0x1c] sm:$0xf]
      %v383 = vunpack.c.l.b16 %v367
      %v384 = vunpack.c.l.b16 %v368
      %v385 = vunpack.c.l.b16 %v369
      %v386 = vunpack.c.l.b16 %v370
      %v387 = vunpack.c.l.b16 %v371
      %v388 = vunpack.c.l.b16 %v372
      %v389 = vunpack.c.l.b16 %v373
      %v390 = vunpack.c.l.b16 %v374
      %v391 = vpack.c.b16 %v384, %v383
      %v392 = vpack.c.b16 %v386, %v385
      %v393 = vpack.c.b16 %v388, %v387
      %v394 = vpack.c.b16 %v390, %v389
      %399 = vmatprep.subr.bf16.mxu0 0
      %400 = vmatpush1.bf16.msra.mxu0 %v254
      %401 = vmatprep.subr.bf16.mxu0 0
      %402 = vmatpush1.bf16.msra.mxu0 %v255
      %403 = vmatprep.subr.bf16.mxu0 0
      %404 = vmatpush1.bf16.msra.mxu0 %v256
      %405 = vmatprep.subr.bf16.mxu0 0
      %406 = vmatpush1.bf16.msra.mxu0 %v257
      %407 = vmatprep.subr.bf16.mxu0 0
      %408 = vmatpush1.bf16.msra.mxu0 %v258
      %409 = vmatprep.subr.bf16.mxu0 0
      %410 = vmatpush1.bf16.msra.mxu0 %v259
      %411 = vmatprep.subr.bf16.mxu0 0
      %412 = vmatpush1.bf16.msra.mxu0 %v260
      %413 = vmatprep.subr.bf16.mxu0 0
      %414 = vmatpush1.bf16.msra.mxu0 %v261
      %415 = vmatprep.subr.bf16.mxu0 0
      %416 = vmatpush1.bf16.msra.mxu0 0
      %417 = vmatprep.subr.bf16.mxu0 0
      %418 = vmatpush1.bf16.msra.mxu0 0
      %419 = vmatprep.subr.bf16.mxu0 0
      %420 = vmatpush1.bf16.msra.mxu0 0
      %421 = vmatprep.subr.bf16.mxu0 0
      %422 = vmatpush1.bf16.msra.mxu0 0
      %423 = vmatprep.subr.bf16.mxu0 0
      %424 = vmatpush1.bf16.msra.mxu0 0
      %425 = vmatprep.subr.bf16.mxu0 0
      %426 = vmatpush1.bf16.msra.mxu0 0
      %427 = vmatprep.subr.bf16.mxu0 0
      %428 = vmatpush1.bf16.msra.mxu0 0
      %429 = vmatprep.subr.bf16.mxu0 0
      %430 = vmatpush1.bf16.msra.mxu0 0
      %431 = vmatprep.mubr.bf16.mxu0 0
      %432 = vmatmul.mubr.bf16.gmra.mrb[0].mxu0 %v391
      %v433 = vpop.f32.mrb[0].mxu0
      %v434 = vadd.f32 0.0, %v433
      %v435 = vpop.f32.mrb[0].mxu0
      %v436 = vpop.f32.mrb[0].mxu0
      %v437 = vadd.f32 0.0, %v436
      %v438 = vpop.f32.mrb[0].mxu0
      %439 = vmatprep.mubr.bf16.mxu0 0
      %440 = vmatmul.mubr.bf16.gmra.mrb[0].mxu0 %v392
      %v441 = vpop.f32.mrb[0].mxu0
      %v442 = vadd.f32 0.0, %v441
      %v443 = vpop.f32.mrb[0].mxu0
      %v444 = vpop.f32.mrb[0].mxu0
      %v445 = vadd.f32 0.0, %v444
      %v446 = vpop.f32.mrb[0].mxu0
      %447 = vmatprep.mubr.bf16.mxu0 0
      %448 = vmatmul.mubr.bf16.gmra.mrb[0].mxu0 %v393
      %v449 = vpop.f32.mrb[0].mxu0
      %v450 = vadd.f32 0.0, %v449
      %v451 = vpop.f32.mrb[0].mxu0
      %v452 = vpop.f32.mrb[0].mxu0
      %v453 = vadd.f32 0.0, %v452
      %v454 = vpop.f32.mrb[0].mxu0
      %455 = vmatprep.mubr.bf16.mxu0 0
      %456 = vmatmul.mubr.bf16.gmra.mrb[0].mxu0 %v394
      %v457 = vpop.f32.mrb[0].mxu0
      %v458 = vadd.f32 0.0, %v457
      %v459 = vpop.f32.mrb[0].mxu0
      %v460 = vpop.f32.mrb[0].mxu0
      %v461 = vadd.f32 0.0, %v460
      %v462 = vpop.f32.mrb[0].mxu0
      %463 = vdwg.mxu0
      %464 = vst [vmem:[%s235] sm:$0xff] %v434
      %465 = vst [vmem:[%s235 + $0x8] sm:$0xff] %v437
      %466 = vst [vmem:[%s235 + $0x10] sm:$0xff] %v442
      %467 = vst [vmem:[%s235 + $0x18] sm:$0xff] %v445
      %468 = vst [vmem:[%s235 + $0x20] sm:$0xff] %v450
      %469 = vst [vmem:[%s235 + $0x28] sm:$0xff] %v453
      %470 = vst [vmem:[%s235 + $0x30] sm:$0xff] %v458
      %471 = vst [vmem:[%s235 + $0x38] sm:$0xff] %v461
      %s472 = smul.u32 8, %s16
      %p473 = scmp.lt.s32.totalorder %s472, 15
      %s474 = scalar_select %p473, %s472, 15
      %s475 = smul.addr %s474, 8
      %s476 = scalar_lea.vmem %s3, %s475
      %s477 = smul.u32 8, %s16
      %p478 = scmp.lt.s32.totalorder %s477, 15
      %s479 = scalar_select %p478, %s477, 15
      %s480 = smul.addr %s479, 8
      %s481 = scalar_lea.vmem %s4, %s480
      // Predicated region
      $region33: #{hitsgnn_forward.4} parent=31 // pred_check
        %p482 = pneg %p107
      $region34: #{hitsgnn_forward.4} parent=31 // pred_check_branch
        %484 = sbr.rel (%p482) target = $region36
      $region35: #{hitsgnn_forward.4} parent=31 // pred_region
        %s485 = smul.u32 8, %s16
      $region36: #{hitsgnn_forward.4} parent=31 // pred_fallthru
        _
      // Predicated region
      $region37: #{hitsgnn_forward.4} parent=31 // pred_check
        %p486 = pneg %p133
      $region38: #{hitsgnn_forward.4} parent=31 // pred_check_branch
        %488 = sbr.rel (%p486) target = $region40
      $region39: #{hitsgnn_forward.4} parent=31 // pred_region
        %s489 = smul.u32 8, %s16
      $region40: #{hitsgnn_forward.4} parent=31 // pred_fallthru
        _
    $region32: #{hitsgnn_forward.4} parent=5 // pred_fallthru
      _
    %p490 = scmp.le.s32.totalorder 2, %s11
    // Predicated region
    $region41: #{hitsgnn_forward.4} parent=5 // pred_check
      %p491 = pneg %p490
    $region42: #{hitsgnn_forward.4} parent=5 // pred_check_branch
      %493 = sbr.rel (%p491) target = $region44
    $region43: #{hitsgnn_forward.4} parent=5 // pred_region
      %s494 = ssub.s32 %s11, 2
      // Predicated region
      $region45: #{hitsgnn_forward.4} parent=43 // pred_check
        %p495 = pneg %p113
      $region46: #{hitsgnn_forward.4} parent=43 // pred_check_branch
        %497 = sbr.rel (%p495) target = $region48
      $region47: #{hitsgnn_forward.4} parent=43 // pred_region
        %s498 = smul.u32 8, %s17
        %p499 = scmp.lt.s32.totalorder %s498, 15
        %s500 = scalar_select %p499, %s498, 15
        %s501 = smul.addr %s500, 8
        %s502 = scalar_lea.vmem %s3, %s501
      $region48: #{hitsgnn_forward.4} parent=43 // pred_fallthru
        _
      // Predicated region
      $region49: #{hitsgnn_forward.4} parent=43 // pred_check
        %p503 = pneg %p139
      $region50: #{hitsgnn_forward.4} parent=43 // pred_check_branch
        %505 = sbr.rel (%p503) target = $region52
      $region51: #{hitsgnn_forward.4} parent=43 // pred_region
        %s506 = smul.u32 8, %s17
        %p507 = scmp.lt.s32.totalorder %s506, 15
        %s508 = scalar_select %p507, %s506, 15
        %s509 = smul.addr %s508, 8
        %s510 = scalar_lea.vmem %s4, %s509
      $region52: #{hitsgnn_forward.4} parent=43 // pred_fallthru
        _
    $region44: #{hitsgnn_forward.4} parent=5 // pred_fallthru
      _
  $region6: #{hitsgnn_forward.4} parent=0 // loop_footer
    %s15 = sadd.s32 1, %s11
  $region7: #{hitsgnn_forward.4} parent=0 // loop_footer_branch
    %10 = sbr.rel target = $region3
  $region8: #{hitsgnn_forward.4} parent=0 // loop_exit
    _

// kernel: hitsgnn_forward.7
$region0: #{hitsgnn_forward.7}
  #allocation0 [shape = 'u32[]', space=smem, size = 0x4, offset = 0x4, fixed_abs, tag = 'smem constant byte address 0x4 - core index']
  #allocation1 [shape = 'u32[144,128]{1,0:T(1,128)}', space=vmem, size = 0x12000, scoped, tag = 'internal scratch']
  %s0 = inlined_call_operand.vmem [shape: bf16[128,128], index: 0, kind: input, shape index: {}]
  %s1 = inlined_call_operand.vmem [shape: f32[128,128], index: 1, kind: input, shape index: {}]
  %s2 = inlined_call_operand.vmem [shape: f32[1,128], index: 2, kind: input, shape index: {}]
  %s3 = inlined_call_operand.vmem [shape: f32[128,128], index: 3, kind: output, shape index: {}]
  %s4 = sld [smem:[#allocation0]]
  $region45: #{hitsgnn_forward.7} parent=0
    _
  %s6 = ssub.s32 1, %s4
  %s7 = scalar_select 0, %s6, %s4
  loop: start=0, step=1, limit=4
  $region2: #{hitsgnn_forward.7} parent=0 // loop_pre_header
    _
  $region3: #{hitsgnn_forward.7} parent=0 // loop_header
    %s9 = sphi 0, %s13
    %p10 = scmp.ge.s32.totalorder %s9, 4
    %s19 = sphi 0, %s21
    %s22 = sphi 0, %s19
    %s23 = sphi 0, %s22
    %s39 = sphi 0, %s23
    %s43 = sphi 0, %s43
    %s45 = sphi 0, %s43
    %s46 = sphi 0, %s45
    %s60 = sphi 0, %s46
    %s64 = sphi 0, %s64
    %s66 = sphi 0, %s64
    %s67 = sphi 0, %s66
    %s81 = sphi 0, %s67
    %s87 = sphi 0, %s89
    %s90 = sphi 0, %s87
    %s91 = sphi 0, %s90
    %s107 = sphi 0, %s91
  $region4: #{hitsgnn_forward.7} parent=0 // loop_header_branch
    %12 = sbr.rel (%p10) target = $region8
  $region5: #{hitsgnn_forward.7} parent=0 // loop_body
    %s14 = ssub.s32 %s9, 1
    %s15 = ssub.s32 %s9, 2
    %s16 = sadd.s32 %s9, 1
    %s17 = ssub.s32 %s9, %s16
    %p18 = scmp.eq.s32.totalorder %s17, 0
    %s20 = sadd.s32 %s19, 1
    %s21 = scalar_select %p18, %s19, %s20
    %p24 = pneg %p18
    %p25 = scmp.eq.s32.totalorder %s9, 1
    %p26 = por %p24, %p25
    %p27 = scmp.ne.s32.totalorder %s19, %s22
    %p28 = scmp.eq.s32.totalorder %s9, 0
    %p29 = por %p27, %p28
    %p30 = scmp.ne.s32.totalorder %s19, %s22
    %p31 = scmp.eq.s32.totalorder %s14, 1
    %p32 = por %p30, %p31
    %p33 = scmp.ne.s32.totalorder %s22, %s23
    %p34 = scmp.eq.s32.totalorder %s14, 0
    %p35 = por %p33, %p34
    %p36 = scmp.ne.s32.totalorder %s22, %s23
    %p37 = scmp.eq.s32.totalorder %s15, 1
    %p38 = por %p36, %p37
    %p40 = scmp.ne.s32.totalorder %s23, %s39
    %p41 = scmp.eq.s32.totalorder %s15, 0
    %p42 = por %p40, %p41
    %s44 = sadd.s32 %s43, 1
    %p47 = scmp.eq.s32.totalorder %s9, 1
    %p48 = scmp.ne.s32.totalorder %s43, %s45
    %p49 = scmp.eq.s32.totalorder %s9, 0
    %p50 = por %p48, %p49
    %p51 = scmp.ne.s32.totalorder %s43, %s45
    %p52 = scmp.eq.s32.totalorder %s14, 1
    %p53 = por %p51, %p52
    %p54 = scmp.ne.s32.totalorder %s45, %s46
    %p55 = scmp.eq.s32.totalorder %s14, 0
    %p56 = por %p54, %p55
    %p57 = scmp.ne.s32.totalorder %s45, %s46
    %p58 = scmp.eq.s32.totalorder %s15, 1
    %p59 = por %p57, %p58
    %p61 = scmp.ne.s32.totalorder %s46, %s60
    %p62 = scmp.eq.s32.totalorder %s15, 0
    %p63 = por %p61, %p62
    %s65 = sadd.s32 %s64, 1
    %p68 = scmp.eq.s32.totalorder %s9, 1
    %p69 = scmp.ne.s32.totalorder %s64, %s66
    %p70 = scmp.eq.s32.totalorder %s9, 0
    %p71 = por %p69, %p70
    %p72 = scmp.ne.s32.totalorder %s64, %s66
    %p73 = scmp.eq.s32.totalorder %s14, 1
    %p74 = por %p72, %p73
    %p75 = scmp.ne.s32.totalorder %s66, %s67
    %p76 = scmp.eq.s32.totalorder %s14, 0
    %p77 = por %p75, %p76
    %p78 = scmp.ne.s32.totalorder %s66, %s67
    %p79 = scmp.eq.s32.totalorder %s15, 1
    %p80 = por %p78, %p79
    %p82 = scmp.ne.s32.totalorder %s67, %s81
    %p83 = scmp.eq.s32.totalorder %s15, 0
    %p84 = por %p82, %p83
    %s85 = ssub.s32 %s9, %s16
    %p86 = scmp.eq.s32.totalorder %s85, 0
    %s88 = sadd.s32 %s87, 1
    %s89 = scalar_select %p86, %s87, %s88
    %p92 = pneg %p86
    %p93 = scmp.eq.s32.totalorder %s9, 1
    %p94 = por %p92, %p93
    %p95 = scmp.ne.s32.totalorder %s87, %s90
    %p96 = scmp.eq.s32.totalorder %s9, 0
    %p97 = por %p95, %p96
    %p98 = scmp.ne.s32.totalorder %s87, %s90
    %p99 = scmp.eq.s32.totalorder %s14, 1
    %p100 = por %p98, %p99
    %p101 = scmp.ne.s32.totalorder %s90, %s91
    %p102 = scmp.eq.s32.totalorder %s14, 0
    %p103 = por %p101, %p102
    %p104 = scmp.ne.s32.totalorder %s90, %s91
    %p105 = scmp.eq.s32.totalorder %s15, 1
    %p106 = por %p104, %p105
    %p108 = scmp.ne.s32.totalorder %s91, %s107
    %p109 = scmp.eq.s32.totalorder %s15, 0
    %p110 = por %p108, %p109
    %p111 = scmp.le.s32.totalorder 1, %s9
    %p112 = scmp.lt.s32.totalorder %s9, 3
    %p113 = pnand %p111, %p112
    %p114 = pneg %p113
    // Predicated region
    $region9: #{hitsgnn_forward.7} parent=5 // pred_check
      _
    $region10: #{hitsgnn_forward.7} parent=5 // pred_check_branch
      %116 = sbr.rel (%p113) target = $region12
    $region11: #{hitsgnn_forward.7} parent=5 // pred_region
      %s117 = ssub.s32 %s9, 1
      // Predicated region
      $region13: #{hitsgnn_forward.7} parent=11 // pred_check
        %p118 = pneg %p56
      $region14: #{hitsgnn_forward.7} parent=11 // pred_check_branch
        %120 = sbr.rel (%p118) target = $region16
      $region15: #{hitsgnn_forward.7} parent=11 // pred_region
        _
      $region16: #{hitsgnn_forward.7} parent=11 // pred_fallthru
        _
      // Predicated region
      $region17: #{hitsgnn_forward.7} parent=11 // pred_check
        %p121 = pneg %p77
      $region18: #{hitsgnn_forward.7} parent=11 // pred_check_branch
        %123 = sbr.rel (%p121) target = $region20
      $region19: #{hitsgnn_forward.7} parent=11 // pred_region
        _
      $region20: #{hitsgnn_forward.7} parent=11 // pred_fallthru
        _
    $region12: #{hitsgnn_forward.7} parent=5 // pred_fallthru
      _
    %p124 = scmp.lt.s32.totalorder %s9, 2
    // Predicated region
    $region21: #{hitsgnn_forward.7} parent=5 // pred_check
      %p125 = pneg %p124
    $region22: #{hitsgnn_forward.7} parent=5 // pred_check_branch
      %127 = sbr.rel (%p125) target = $region24
    $region23: #{hitsgnn_forward.7} parent=5 // pred_region
      // Predicated region
      $region25: #{hitsgnn_forward.7} parent=23 // pred_check
        %p128 = pneg %p29
      $region26: #{hitsgnn_forward.7} parent=23 // pred_check_branch
        %130 = sbr.rel (%p128) target = $region28
      $region27: #{hitsgnn_forward.7} parent=23 // pred_region
        %s131 = smul.u32 8, %s9
        %p132 = scmp.lt.s32.totalorder %s131, 15
        %s133 = scalar_select %p132, %s131, 15
        %s134 = smul.addr %s133, 4
        %s135 = scalar_lea.vmem %s0, %s134
        %s136 = smul.u32 8, %s9
      $region28: #{hitsgnn_forward.7} parent=23 // pred_fallthru
        _
    $region24: #{hitsgnn_forward.7} parent=5 // pred_fallthru
      _
    %p137 = scmp.le.s32.totalorder 1, %s9
    %p138 = scmp.lt.s32.totalorder %s9, 3
    %p139 = pnand %p137, %p138
    %p140 = pneg %p139
    // Predicated region
    $region29: #{hitsgnn_forward.7} parent=5 // pred_check
      _
    $region30: #{hitsgnn_forward.7} parent=5 // pred_check_branch
      %142 = sbr.rel (%p139) target = $region32
    $region31: #{hitsgnn_forward.7} parent=5 // pred_region
      %s143 = ssub.s32 %s9, 1
      %s144 = smul.u32 8, %s14
      %p145 = scmp.lt.s32.totalorder %s144, 15
      %s146 = scalar_select %p145, %s144, 15
      %s147 = smul.addr %s146, 4
      %s148 = scalar_lea.vmem %s0, %s147
      %p149 = pneg %p35
      %p150 = pneg %p32
      %p151 = pneg %p56
      %p152 = pneg %p53
      %p153 = pneg %p77
      %p154 = pneg %p74
      %p155 = pneg %p103
      %p156 = pneg %p100
      %s157 = smul.u32 8, %s14
      %p158 = scmp.lt.s32.totalorder %s157, 15
      %s159 = scalar_select %p158, %s157, 15
      %s160 = smul.addr %s159, 8
      %s161 = scalar_lea.vmem %s3, %s160
      %s162 = smul.u32 8, %s14
      %p163 = scmp.lt.s32.totalorder %s162, 15
      %s164 = scalar_select %p163, %s162, 15
      %s165 = smul.addr %s164, 4
      %s166 = scalar_lea.vmem %s0, %s165
      %s167 = smul.u32 8, %s14
      %s168 = smul.u32 8, %s14
      %p169 = scmp.lt.s32.totalorder %s168, 15
      %s170 = scalar_select %p169, %s168, 15
      %s171 = smul.addr %s170, 8
      %s172 = scalar_lea.vmem %s3, %s171
      %s173 = smul.u32 8, %s14
      %v175 = vld [vmem:[%s166] sm:$0xf]
      %v176 = vld [vmem:[%s166 + $0x4] sm:$0xf]
      %v177 = vld [vmem:[%s166 + $0x8] sm:$0xf]
      %v178 = vld [vmem:[%s166 + $0xc] sm:$0xf]
      %v179 = vld [vmem:[%s166 + $0x10] sm:$0xf]
      %v180 = vld [vmem:[%s166 + $0x14] sm:$0xf]
      %v181 = vld [vmem:[%s166 + $0x18] sm:$0xf]
      %v182 = vld [vmem:[%s166 + $0x1c] sm:$0xf]
      %v183 = vld [vmem:[%s1] sm:$0xff]
      %v184 = vld [vmem:[%s1 + $0x8] sm:$0xff]
      %v185 = vld [vmem:[%s1 + $0x10] sm:$0xff]
      %v186 = vld [vmem:[%s1 + $0x18] sm:$0xff]
      %v187 = vld [vmem:[%s1 + $0x20] sm:$0xff]
      %v188 = vld [vmem:[%s1 + $0x28] sm:$0xff]
      %v189 = vld [vmem:[%s1 + $0x30] sm:$0xff]
      %v190 = vld [vmem:[%s1 + $0x38] sm:$0xff]
      %v191 = vld [vmem:[%s1 + $0x40] sm:$0xff]
      %v192 = vld [vmem:[%s1 + $0x48] sm:$0xff]
      %v193 = vld [vmem:[%s1 + $0x50] sm:$0xff]
      %v194 = vld [vmem:[%s1 + $0x58] sm:$0xff]
      %v195 = vld [vmem:[%s1 + $0x60] sm:$0xff]
      %v196 = vld [vmem:[%s1 + $0x68] sm:$0xff]
      %v197 = vld [vmem:[%s1 + $0x70] sm:$0xff]
      %v198 = vld [vmem:[%s1 + $0x78] sm:$0xff]
      %v199 = vpack.c.bf16 %v184, %v183
      %v200 = vpack.c.bf16 %v186, %v185
      %v201 = vpack.c.bf16 %v188, %v187
      %v202 = vpack.c.bf16 %v190, %v189
      %v203 = vpack.c.bf16 %v192, %v191
      %v204 = vpack.c.bf16 %v194, %v193
      %v205 = vpack.c.bf16 %v196, %v195
      %v206 = vpack.c.bf16 %v198, %v197
      %v207 = vld [vmem:[%s2] sm:$0x1]
      %v209 = vlaneseq
      %v210 = vshrl.u32 %v209, 7
      %v211 = vsub.s32 0, %v210
      %v212 = vrot.slane %v207, %v211
      %v222 = vunpack.c.l.b16 %v175
      %v223 = vunpack.c.l.b16 %v176
      %v224 = vunpack.c.l.b16 %v177
      %v225 = vunpack.c.l.b16 %v178
      %v226 = vunpack.c.l.b16 %v179
      %v227 = vunpack.c.l.b16 %v180
      %v228 = vunpack.c.l.b16 %v181
      %v229 = vunpack.c.l.b16 %v182
      %v230 = vpack.c.b16 %v223, %v222
      %v231 = vpack.c.b16 %v225, %v224
      %v232 = vpack.c.b16 %v227, %v226
      %v233 = vpack.c.b16 %v229, %v228
      %238 = vmatprep.subr.bf16.mxu0 0
      %239 = vmatpush1.bf16.msra.mxu0 %v199
      %240 = vmatprep.subr.bf16.mxu0 0
      %241 = vmatpush1.bf16.msra.mxu0 %v200
      %242 = vmatprep.subr.bf16.mxu0 0
      %243 = vmatpush1.bf16.msra.mxu0 %v201
      %244 = vmatprep.subr.bf16.mxu0 0
      %245 = vmatpush1.bf16.msra.mxu0 %v202
      %246 = vmatprep.subr.bf16.mxu0 0
      %247 = vmatpush1.bf16.msra.mxu0 %v203
      %248 = vmatprep.subr.bf16.mxu0 0
      %249 = vmatpush1.bf16.msra.mxu0 %v204
      %250 = vmatprep.subr.bf16.mxu0 0
      %251 = vmatpush1.bf16.msra.mxu0 %v205
      %252 = vmatprep.subr.bf16.mxu0 0
      %253 = vmatpush1.bf16.msra.mxu0 %v206
      %254 = vmatprep.subr.bf16.mxu0 0
      %255 = vmatpush1.bf16.msra.mxu0 0
      %256 = vmatprep.subr.bf16.mxu0 0
      %257 = vmatpush1.bf16.msra.mxu0 0
      %258 = vmatprep.subr.bf16.mxu0 0
      %259 = vmatpush1.bf16.msra.mxu0 0
      %260 = vmatprep.subr.bf16.mxu0 0
      %261 = vmatpush1.bf16.msra.mxu0 0
      %262 = vmatprep.subr.bf16.mxu0 0
      %263 = vmatpush1.bf16.msra.mxu0 0
      %264 = vmatprep.subr.bf16.mxu0 0
      %265 = vmatpush1.bf16.msra.mxu0 0
      %266 = vmatprep.subr.bf16.mxu0 0
      %267 = vmatpush1.bf16.msra.mxu0 0
      %268 = vmatprep.subr.bf16.mxu0 0
      %269 = vmatpush1.bf16.msra.mxu0 0
      %270 = vmatprep.mubr.bf16.mxu0 0
      %271 = vmatmul.mubr.bf16.gmra.mrb[0].mxu0 %v230
      %v272 = vpop.f32.mrb[0].mxu0
      %v273 = vadd.f32 %v212, %v272
      %v274 = vpop.f32.mrb[0].mxu0
      %v275 = vpop.f32.mrb[0].mxu0
      %v276 = vadd.f32 %v212, %v275
      %v277 = vpop.f32.mrb[0].mxu0
      %278 = vmatprep.mubr.bf16.mxu0 0
      %279 = vmatmul.mubr.bf16.gmra.mrb[0].mxu0 %v231
      %v280 = vpop.f32.mrb[0].mxu0
      %v281 = vadd.f32 %v212, %v280
      %v282 = vpop.f32.mrb[0].mxu0
      %v283 = vpop.f32.mrb[0].mxu0
      %v284 = vadd.f32 %v212, %v283
      %v285 = vpop.f32.mrb[0].mxu0
      %286 = vmatprep.mubr.bf16.mxu0 0
      %287 = vmatmul.mubr.bf16.gmra.mrb[0].mxu0 %v232
      %v288 = vpop.f32.mrb[0].mxu0
      %v289 = vadd.f32 %v212, %v288
      %v290 = vpop.f32.mrb[0].mxu0
      %v291 = vpop.f32.mrb[0].mxu0
      %v292 = vadd.f32 %v212, %v291
      %v293 = vpop.f32.mrb[0].mxu0
      %294 = vmatprep.mubr.bf16.mxu0 0
      %295 = vmatmul.mubr.bf16.gmra.mrb[0].mxu0 %v233
      %v296 = vpop.f32.mrb[0].mxu0
      %v297 = vadd.f32 %v212, %v296
      %v298 = vpop.f32.mrb[0].mxu0
      %v299 = vpop.f32.mrb[0].mxu0
      %v300 = vadd.f32 %v212, %v299
      %v301 = vpop.f32.mrb[0].mxu0
      %302 = vdwg.mxu0
      %303 = vmax.xlane.f32.xlu0 %v273
      %v304 = vpop.xlane.xlu0 %303
      %305 = vmax.xlane.f32.xlu0 %v276
      %v306 = vpop.xlane.xlu0 %305
      %307 = vmax.xlane.f32.xlu0 %v281
      %v308 = vpop.xlane.xlu0 %307
      %309 = vmax.xlane.f32.xlu0 %v284
      %v310 = vpop.xlane.xlu0 %309
      %311 = vmax.xlane.f32.xlu0 %v289
      %v312 = vpop.xlane.xlu0 %311
      %313 = vmax.xlane.f32.xlu0 %v292
      %v314 = vpop.xlane.xlu0 %313
      %315 = vmax.xlane.f32.xlu0 %v297
      %v316 = vpop.xlane.xlu0 %315
      %317 = vmax.xlane.f32.xlu0 %v300
      %v318 = vpop.xlane.xlu0 %317
      %v319 = vsub.f32 %v273, %v304
      %v320 = vsub.f32 %v276, %v306
      %v321 = vsub.f32 %v281, %v308
      %v322 = vsub.f32 %v284, %v310
      %v323 = vsub.f32 %v289, %v312
      %v324 = vsub.f32 %v292, %v314
      %v325 = vsub.f32 %v297, %v316
      %v326 = vsub.f32 %v300, %v318
      %v327 = vmul.f32 %v319, 1.442695
      %v328 = vpow.pop %v327
      %v329 = vmul.f32 %v320, 1.442695
      %v330 = vpow.pop %v329
      %v331 = vmul.f32 %v321, 1.442695
      %v332 = vpow.pop %v331
      %v333 = vmul.f32 %v322, 1.442695
      %v334 = vpow.pop %v333
      %v335 = vmul.f32 %v323, 1.442695
      %v336 = vpow.pop %v335
      %v337 = vmul.f32 %v324, 1.442695
      %v338 = vpow.pop %v337
      %v339 = vmul.f32 %v325, 1.442695
      %v340 = vpow.pop %v339
      %v341 = vmul.f32 %v326, 1.442695
      %v342 = vpow.pop %v341
      %343 = vadd.xlane.f32.xlu0 %v328
      %v344 = vpop.xlane.xlu0 %343
      %345 = vadd.xlane.f32.xlu0 %v330
      %v346 = vpop.xlane.xlu0 %345
      %347 = vadd.xlane.f32.xlu0 %v332
      %v348 = vpop.xlane.xlu0 %347
      %349 = vadd.xlane.f32.xlu0 %v334
      %v350 = vpop.xlane.xlu0 %349
      %351 = vadd.xlane.f32.xlu0 %v336
      %v352 = vpop.xlane.xlu0 %351
      %353 = vadd.xlane.f32.xlu0 %v338
      %v354 = vpop.xlane.xlu0 %353
      %355 = vadd.xlane.f32.xlu0 %v340
      %v356 = vpop.xlane.xlu0 %355
      %357 = vadd.xlane.f32.xlu0 %v342
      %v358 = vpop.xlane.xlu0 %357
      %v359 = vlog2.pop %v344
      %v360 = vmul.f32 %v359, 0.6931472
      %v361 = vlog2.pop %v346
      %v362 = vmul.f32 %v361, 0.6931472
      %v363 = vlog2.pop %v348
      %v364 = vmul.f32 %v363, 0.6931472
      %v365 = vlog2.pop %v350
      %v366 = vmul.f32 %v365, 0.6931472
      %v367 = vlog2.pop %v352
      %v368 = vmul.f32 %v367, 0.6931472
      %v369 = vlog2.pop %v354
      %v370 = vmul.f32 %v369, 0.6931472
      %v371 = vlog2.pop %v356
      %v372 = vmul.f32 %v371, 0.6931472
      %v373 = vlog2.pop %v358
      %v374 = vmul.f32 %v373, 0.6931472
      %v375 = vsub.f32 %v319, %v360
      %v376 = vsub.f32 %v320, %v362
      %v377 = vsub.f32 %v321, %v364
      %v378 = vsub.f32 %v322, %v366
      %v379 = vsub.f32 %v323, %v368
      %v380 = vsub.f32 %v324, %v370
      %v381 = vsub.f32 %v325, %v372
      %v382 = vsub.f32 %v326, %v374
      %383 = vst [vmem:[%s172] sm:$0xff] %v375
      %384 = vst [vmem:[%s172 + $0x8] sm:$0xff] %v376
      %385 = vst [vmem:[%s172 + $0x10] sm:$0xff] %v377
      %386 = vst [vmem:[%s172 + $0x18] sm:$0xff] %v378
      %387 = vst [vmem:[%s172 + $0x20] sm:$0xff] %v379
      %388 = vst [vmem:[%s172 + $0x28] sm:$0xff] %v380
      %389 = vst [vmem:[%s172 + $0x30] sm:$0xff] %v381
      %390 = vst [vmem:[%s172 + $0x38] sm:$0xff] %v382
      %s391 = smul.u32 8, %s14
      %p392 = scmp.lt.s32.totalorder %s391, 15
      %s393 = scalar_select %p392, %s391, 15
      %s394 = smul.addr %s393, 8
      %s395 = scalar_lea.vmem %s3, %s394
      // Predicated region
      $region33: #{hitsgnn_forward.7} parent=31 // pred_check
        %p396 = pneg %p100
      $region34: #{hitsgnn_forward.7} parent=31 // pred_check_branch
        %398 = sbr.rel (%p396) target = $region36
      $region35: #{hitsgnn_forward.7} parent=31 // pred_region
        %s399 = smul.u32 8, %s14
      $region36: #{hitsgnn_forward.7} parent=31 // pred_fallthru
        _
    $region32: #{hitsgnn_forward.7} parent=5 // pred_fallthru
      _
    %p400 = scmp.le.s32.totalorder 2, %s9
    // Predicated region
    $region37: #{hitsgnn_forward.7} parent=5 // pred_check
      %p401 = pneg %p400
    $region38: #{hitsgnn_forward.7} parent=5 // pred_check_branch
      %403 = sbr.rel (%p401) target = $region40
    $region39: #{hitsgnn_forward.7} parent=5 // pred_region
      %s404 = ssub.s32 %s9, 2
      // Predicated region
      $region41: #{hitsgnn_forward.7} parent=39 // pred_check
        %p405 = pneg %p106
      $region42: #{hitsgnn_forward.7} parent=39 // pred_check_branch
        %407 = sbr.rel (%p405) target = $region44
      $region43: #{hitsgnn_forward.7} parent=39 // pred_region
        %s408 = smul.u32 8, %s15
        %p409 = scmp.lt.s32.totalorder %s408, 15
        %s410 = scalar_select %p409, %s408, 15
        %s411 = smul.addr %s410, 8
        %s412 = scalar_lea.vmem %s3, %s411
      $region44: #{hitsgnn_forward.7} parent=39 // pred_fallthru
        _
    $region40: #{hitsgnn_forward.7} parent=5 // pred_fallthru
      _
  $region6: #{hitsgnn_forward.7} parent=0 // loop_footer
    %s13 = sadd.s32 1, %s9
  $region7: #{hitsgnn_forward.7} parent=0 // loop_footer_branch
    %8 = sbr.rel target = $region3
  $region8: #{hitsgnn_forward.7} parent=0 // loop_exit
    _

// kernel: hitsgnn_forward.5
$region0: #{hitsgnn_forward.5}
  #allocation0 [shape = 'u32[]', space=smem, size = 0x4, offset = 0x4, fixed_abs, tag = 'smem constant byte address 0x4 - core index']
  #allocation1 [shape = 'u32[144,128]{1,0:T(1,128)}', space=vmem, size = 0x12000, scoped, tag = 'internal scratch']
  %s0 = inlined_call_operand.vmem [shape: bf16[128,128], index: 0, kind: input, shape index: {}]
  %s1 = inlined_call_operand.vmem [shape: bf16[128,128], index: 1, kind: input, shape index: {}]
  %s2 = inlined_call_operand.vmem [shape: f32[128,128], index: 2, kind: input, shape index: {}]
  %s3 = inlined_call_operand.vmem [shape: f32[128,128], index: 3, kind: input, shape index: {}]
  %s4 = inlined_call_operand.vmem [shape: bf16[128,128], index: 4, kind: input, shape index: {}]
  %s5 = inlined_call_operand.vmem [shape: f32[128,128], index: 5, kind: output, shape index: {}]
  %s6 = sld [smem:[#allocation0]]
  $region53: #{hitsgnn_forward.5} parent=0
    _
  %s8 = ssub.s32 1, %s6
  %s9 = scalar_select 0, %s8, %s6
  loop: start=0, step=1, limit=4
  $region2: #{hitsgnn_forward.5} parent=0 // loop_pre_header
    _
  $region3: #{hitsgnn_forward.5} parent=0 // loop_header
    %s11 = sphi 0, %s15
    %p12 = scmp.ge.s32.totalorder %s11, 4
    %s21 = sphi 0, %s23
    %s24 = sphi 0, %s21
    %s25 = sphi 0, %s24
    %s41 = sphi 0, %s25
    %s47 = sphi 0, %s49
    %s50 = sphi 0, %s47
    %s51 = sphi 0, %s50
    %s67 = sphi 0, %s51
    %s71 = sphi 0, %s71
    %s73 = sphi 0, %s71
    %s74 = sphi 0, %s73
    %s88 = sphi 0, %s74
    %s92 = sphi 0, %s92
    %s94 = sphi 0, %s92
    %s95 = sphi 0, %s94
    %s109 = sphi 0, %s95
    %s113 = sphi 0, %s113
    %s115 = sphi 0, %s113
    %s116 = sphi 0, %s115
    %s130 = sphi 0, %s116
    %s136 = sphi 0, %s138
    %s139 = sphi 0, %s136
    %s140 = sphi 0, %s139
    %s156 = sphi 0, %s140
  $region4: #{hitsgnn_forward.5} parent=0 // loop_header_branch
    %14 = sbr.rel (%p12) target = $region8
  $region5: #{hitsgnn_forward.5} parent=0 // loop_body
    %s16 = ssub.s32 %s11, 1
    %s17 = ssub.s32 %s11, 2
    %s18 = sadd.s32 %s11, 1
    %s19 = ssub.s32 %s11, %s18
    %p20 = scmp.eq.s32.totalorder %s19, 0
    %s22 = sadd.s32 %s21, 1
    %s23 = scalar_select %p20, %s21, %s22
    %p26 = pneg %p20
    %p27 = scmp.eq.s32.totalorder %s11, 1
    %p28 = por %p26, %p27
    %p29 = scmp.ne.s32.totalorder %s21, %s24
    %p30 = scmp.eq.s32.totalorder %s11, 0
    %p31 = por %p29, %p30
    %p32 = scmp.ne.s32.totalorder %s21, %s24
    %p33 = scmp.eq.s32.totalorder %s16, 1
    %p34 = por %p32, %p33
    %p35 = scmp.ne.s32.totalorder %s24, %s25
    %p36 = scmp.eq.s32.totalorder %s16, 0
    %p37 = por %p35, %p36
    %p38 = scmp.ne.s32.totalorder %s24, %s25
    %p39 = scmp.eq.s32.totalorder %s17, 1
    %p40 = por %p38, %p39
    %p42 = scmp.ne.s32.totalorder %s25, %s41
    %p43 = scmp.eq.s32.totalorder %s17, 0
    %p44 = por %p42, %p43
    %s45 = ssub.s32 %s11, %s18
    %p46 = scmp.eq.s32.totalorder %s45, 0
    %s48 = sadd.s32 %s47, 1
    %s49 = scalar_select %p46, %s47, %s48
    %p52 = pneg %p46
    %p53 = scmp.eq.s32.totalorder %s11, 1
    %p54 = por %p52, %p53
    %p55 = scmp.ne.s32.totalorder %s47, %s50
    %p56 = scmp.eq.s32.totalorder %s11, 0
    %p57 = por %p55, %p56
    %p58 = scmp.ne.s32.totalorder %s47, %s50
    %p59 = scmp.eq.s32.totalorder %s16, 1
    %p60 = por %p58, %p59
    %p61 = scmp.ne.s32.totalorder %s50, %s51
    %p62 = scmp.eq.s32.totalorder %s16, 0
    %p63 = por %p61, %p62
    %p64 = scmp.ne.s32.totalorder %s50, %s51
    %p65 = scmp.eq.s32.totalorder %s17, 1
    %p66 = por %p64, %p65
    %p68 = scmp.ne.s32.totalorder %s51, %s67
    %p69 = scmp.eq.s32.totalorder %s17, 0
    %p70 = por %p68, %p69
    %s72 = sadd.s32 %s71, 1
    %p75 = scmp.eq.s32.totalorder %s11, 1
    %p76 = scmp.ne.s32.totalorder %s71, %s73
    %p77 = scmp.eq.s32.totalorder %s11, 0
    %p78 = por %p76, %p77
    %p79 = scmp.ne.s32.totalorder %s71, %s73
    %p80 = scmp.eq.s32.totalorder %s16, 1
    %p81 = por %p79, %p80
    %p82 = scmp.ne.s32.totalorder %s73, %s74
    %p83 = scmp.eq.s32.totalorder %s16, 0
    %p84 = por %p82, %p83
    %p85 = scmp.ne.s32.totalorder %s73, %s74
    %p86 = scmp.eq.s32.totalorder %s17, 1
    %p87 = por %p85, %p86
    %p89 = scmp.ne.s32.totalorder %s74, %s88
    %p90 = scmp.eq.s32.totalorder %s17, 0
    %p91 = por %p89, %p90
    %s93 = sadd.s32 %s92, 1
    %p96 = scmp.eq.s32.totalorder %s11, 1
    %p97 = scmp.ne.s32.totalorder %s92, %s94
    %p98 = scmp.eq.s32.totalorder %s11, 0
    %p99 = por %p97, %p98
    %p100 = scmp.ne.s32.totalorder %s92, %s94
    %p101 = scmp.eq.s32.totalorder %s16, 1
    %p102 = por %p100, %p101
    %p103 = scmp.ne.s32.totalorder %s94, %s95
    %p104 = scmp.eq.s32.totalorder %s16, 0
    %p105 = por %p103, %p104
    %p106 = scmp.ne.s32.totalorder %s94, %s95
    %p107 = scmp.eq.s32.totalorder %s17, 1
    %p108 = por %p106, %p107
    %p110 = scmp.ne.s32.totalorder %s95, %s109
    %p111 = scmp.eq.s32.totalorder %s17, 0
    %p112 = por %p110, %p111
    %s114 = sadd.s32 %s113, 1
    %p117 = scmp.eq.s32.totalorder %s11, 1
    %p118 = scmp.ne.s32.totalorder %s113, %s115
    %p119 = scmp.eq.s32.totalorder %s11, 0
    %p120 = por %p118, %p119
    %p121 = scmp.ne.s32.totalorder %s113, %s115
    %p122 = scmp.eq.s32.totalorder %s16, 1
    %p123 = por %p121, %p122
    %p124 = scmp.ne.s32.totalorder %s115, %s116
    %p125 = scmp.eq.s32.totalorder %s16, 0
    %p126 = por %p124, %p125
    %p127 = scmp.ne.s32.totalorder %s115, %s116
    %p128 = scmp.eq.s32.totalorder %s17, 1
    %p129 = por %p127, %p128
    %p131 = scmp.ne.s32.totalorder %s116, %s130
    %p132 = scmp.eq.s32.totalorder %s17, 0
    %p133 = por %p131, %p132
    %s134 = ssub.s32 %s11, %s18
    %p135 = scmp.eq.s32.totalorder %s134, 0
    %s137 = sadd.s32 %s136, 1
    %s138 = scalar_select %p135, %s136, %s137
    %p141 = pneg %p135
    %p142 = scmp.eq.s32.totalorder %s11, 1
    %p143 = por %p141, %p142
    %p144 = scmp.ne.s32.totalorder %s136, %s139
    %p145 = scmp.eq.s32.totalorder %s11, 0
    %p146 = por %p144, %p145
    %p147 = scmp.ne.s32.totalorder %s136, %s139
    %p148 = scmp.eq.s32.totalorder %s16, 1
    %p149 = por %p147, %p148
    %p150 = scmp.ne.s32.totalorder %s139, %s140
    %p151 = scmp.eq.s32.totalorder %s16, 0
    %p152 = por %p150, %p151
    %p153 = scmp.ne.s32.totalorder %s139, %s140
    %p154 = scmp.eq.s32.totalorder %s17, 1
    %p155 = por %p153, %p154
    %p157 = scmp.ne.s32.totalorder %s140, %s156
    %p158 = scmp.eq.s32.totalorder %s17, 0
    %p159 = por %p157, %p158
    %p160 = scmp.le.s32.totalorder 1, %s11
    %p161 = scmp.lt.s32.totalorder %s11, 3
    %p162 = pnand %p160, %p161
    %p163 = pneg %p162
    // Predicated region
    $region9: #{hitsgnn_forward.5} parent=5 // pred_check
      _
    $region10: #{hitsgnn_forward.5} parent=5 // pred_check_branch
      %165 = sbr.rel (%p162) target = $region12
    $region11: #{hitsgnn_forward.5} parent=5 // pred_region
      %s166 = ssub.s32 %s11, 1
      // Predicated region
      $region13: #{hitsgnn_forward.5} parent=11 // pred_check
        %p167 = pneg %p84
      $region14: #{hitsgnn_forward.5} parent=11 // pred_check_branch
        %169 = sbr.rel (%p167) target = $region16
      $region15: #{hitsgnn_forward.5} parent=11 // pred_region
        _
      $region16: #{hitsgnn_forward.5} parent=11 // pred_fallthru
        _
      // Predicated region
      $region17: #{hitsgnn_forward.5} parent=11 // pred_check
        %p170 = pneg %p105
      $region18: #{hitsgnn_forward.5} parent=11 // pred_check_branch
        %172 = sbr.rel (%p170) target = $region20
      $region19: #{hitsgnn_forward.5} parent=11 // pred_region
        _
      $region20: #{hitsgnn_forward.5} parent=11 // pred_fallthru
        _
      // Predicated region
      $region21: #{hitsgnn_forward.5} parent=11 // pred_check
        %p173 = pneg %p126
      $region22: #{hitsgnn_forward.5} parent=11 // pred_check_branch
        %175 = sbr.rel (%p173) target = $region24
      $region23: #{hitsgnn_forward.5} parent=11 // pred_region
        _
      $region24: #{hitsgnn_forward.5} parent=11 // pred_fallthru
        _
    $region12: #{hitsgnn_forward.5} parent=5 // pred_fallthru
      _
    %p176 = scmp.lt.s32.totalorder %s11, 2
    // Predicated region
    $region25: #{hitsgnn_forward.5} parent=5 // pred_check
      %p177 = pneg %p176
    $region26: #{hitsgnn_forward.5} parent=5 // pred_check_branch
      %179 = sbr.rel (%p177) target = $region28
    $region27: #{hitsgnn_forward.5} parent=5 // pred_region
      // Predicated region
      $region29: #{hitsgnn_forward.5} parent=27 // pred_check
        %p180 = pneg %p31
      $region30: #{hitsgnn_forward.5} parent=27 // pred_check_branch
        %182 = sbr.rel (%p180) target = $region32
      $region31: #{hitsgnn_forward.5} parent=27 // pred_region
        %s183 = smul.u32 8, %s11
        %p184 = scmp.lt.s32.totalorder %s183, 15
        %s185 = scalar_select %p184, %s183, 15
        %s186 = smul.addr %s185, 4
        %s187 = scalar_lea.vmem %s0, %s186
        %s188 = smul.u32 8, %s11
      $region32: #{hitsgnn_forward.5} parent=27 // pred_fallthru
        _
      // Predicated region
      $region33: #{hitsgnn_forward.5} parent=27 // pred_check
        %p189 = pneg %p57
      $region34: #{hitsgnn_forward.5} parent=27 // pred_check_branch
        %191 = sbr.rel (%p189) target = $region36
      $region35: #{hitsgnn_forward.5} parent=27 // pred_region
        %s192 = smul.u32 8, %s11
        %p193 = scmp.lt.s32.totalorder %s192, 15
        %s194 = scalar_select %p193, %s192, 15
        %s195 = smul.addr %s194, 4
        %s196 = scalar_lea.vmem %s1, %s195
        %s197 = smul.u32 8, %s11
      $region36: #{hitsgnn_forward.5} parent=27 // pred_fallthru
        _
    $region28: #{hitsgnn_forward.5} parent=5 // pred_fallthru
      _
    %p198 = scmp.le.s32.totalorder 1, %s11
    %p199 = scmp.lt.s32.totalorder %s11, 3
    %p200 = pnand %p198, %p199
    %p201 = pneg %p200
    // Predicated region
    $region37: #{hitsgnn_forward.5} parent=5 // pred_check
      _
    $region38: #{hitsgnn_forward.5} parent=5 // pred_check_branch
      %203 = sbr.rel (%p200) target = $region40
    $region39: #{hitsgnn_forward.5} parent=5 // pred_region
      %s204 = ssub.s32 %s11, 1
      %s205 = smul.u32 8, %s16
      %p206 = scmp.lt.s32.totalorder %s205, 15
      %s207 = scalar_select %p206, %s205, 15
      %s208 = smul.addr %s207, 4
      %s209 = scalar_lea.vmem %s0, %s208
      %p210 = pneg %p37
      %p211 = pneg %p34
      %s212 = smul.u32 8, %s16
      %p213 = scmp.lt.s32.totalorder %s212, 15
      %s214 = scalar_select %p213, %s212, 15
      %s215 = smul.addr %s214, 4
      %s216 = scalar_lea.vmem %s1, %s215
      %p217 = pneg %p63
      %p218 = pneg %p60
      %p219 = pneg %p84
      %p220 = pneg %p81
      %p221 = pneg %p105
      %p222 = pneg %p102
      %p223 = pneg %p126
      %p224 = pneg %p123
      %p225 = pneg %p152
      %p226 = pneg %p149
      %s227 = smul.u32 8, %s16
      %p228 = scmp.lt.s32.totalorder %s227, 15
      %s229 = scalar_select %p228, %s227, 15
      %s230 = smul.addr %s229, 8
      %s231 = scalar_lea.vmem %s5, %s230
      %s232 = smul.u32 8, %s16
      %p233 = scmp.lt.s32.totalorder %s232, 15
      %s234 = scalar_select %p233, %s232, 15
      %s235 = smul.addr %s234, 4
      %s236 = scalar_lea.vmem %s0, %s235
      %s237 = smul.u32 8, %s16
      %s238 = smul.u32 8, %s16
      %p239 = scmp.lt.s32.totalorder %s238, 15
      %s240 = scalar_select %p239, %s238, 15
      %s241 = smul.addr %s240, 4
      %s242 = scalar_lea.vmem %s1, %s241
      %s243 = smul.u32 8, %s16
      %s244 = smul.u32 8, %s16
      %p245 = scmp.lt.s32.totalorder %s244, 15
      %s246 = scalar_select %p245, %s244, 15
      %s247 = smul.addr %s246, 8
      %s248 = scalar_lea.vmem %s5, %s247
      %s249 = smul.u32 8, %s16
      %v251 = vld [vmem:[%s236] sm:$0xf]
      %v252 = vld [vmem:[%s236 + $0x4] sm:$0xf]
      %v253 = vld [vmem:[%s236 + $0x8] sm:$0xf]
      %v254 = vld [vmem:[%s236 + $0xc] sm:$0xf]
      %v255 = vld [vmem:[%s236 + $0x10] sm:$0xf]
      %v256 = vld [vmem:[%s236 + $0x14] sm:$0xf]
      %v257 = vld [vmem:[%s236 + $0x18] sm:$0xf]
      %v258 = vld [vmem:[%s236 + $0x1c] sm:$0xf]
      %v259 = vld [vmem:[%s2] sm:$0xff]
      %v260 = vld [vmem:[%s2 + $0x8] sm:$0xff]
      %v261 = vld [vmem:[%s2 + $0x10] sm:$0xff]
      %v262 = vld [vmem:[%s2 + $0x18] sm:$0xff]
      %v263 = vld [vmem:[%s2 + $0x20] sm:$0xff]
      %v264 = vld [vmem:[%s2 + $0x28] sm:$0xff]
      %v265 = vld [vmem:[%s2 + $0x30] sm:$0xff]
      %v266 = vld [vmem:[%s2 + $0x38] sm:$0xff]
      %v267 = vld [vmem:[%s2 + $0x40] sm:$0xff]
      %v268 = vld [vmem:[%s2 + $0x48] sm:$0xff]
      %v269 = vld [vmem:[%s2 + $0x50] sm:$0xff]
      %v270 = vld [vmem:[%s2 + $0x58] sm:$0xff]
      %v271 = vld [vmem:[%s2 + $0x60] sm:$0xff]
      %v272 = vld [vmem:[%s2 + $0x68] sm:$0xff]
      %v273 = vld [vmem:[%s2 + $0x70] sm:$0xff]
      %v274 = vld [vmem:[%s2 + $0x78] sm:$0xff]
      %v275 = vpack.c.bf16 %v260, %v259
      %v276 = vpack.c.bf16 %v262, %v261
      %v277 = vpack.c.bf16 %v264, %v263
      %v278 = vpack.c.bf16 %v266, %v265
      %v279 = vpack.c.bf16 %v268, %v267
      %v280 = vpack.c.bf16 %v270, %v269
      %v281 = vpack.c.bf16 %v272, %v271
      %v282 = vpack.c.bf16 %v274, %v273
      %v291 = vunpack.c.l.b16 %v251
      %v292 = vunpack.c.l.b16 %v252
      %v293 = vunpack.c.l.b16 %v253
      %v294 = vunpack.c.l.b16 %v254
      %v295 = vunpack.c.l.b16 %v255
      %v296 = vunpack.c.l.b16 %v256
      %v297 = vunpack.c.l.b16 %v257
      %v298 = vunpack.c.l.b16 %v258
      %v299 = vpack.c.b16 %v292, %v291
      %v300 = vpack.c.b16 %v294, %v293
      %v301 = vpack.c.b16 %v296, %v295
      %v302 = vpack.c.b16 %v298, %v297
      %307 = vmatprep.subr.bf16.mxu0 0
      %308 = vmatpush1.bf16.msra.mxu0 %v275
      %309 = vmatprep.subr.bf16.mxu0 0
      %310 = vmatpush1.bf16.msra.mxu0 %v276
      %311 = vmatprep.subr.bf16.mxu0 0
      %312 = vmatpush1.bf16.msra.mxu0 %v277
      %313 = vmatprep.subr.bf16.mxu0 0
      %314 = vmatpush1.bf16.msra.mxu0 %v278
      %315 = vmatprep.subr.bf16.mxu0 0
      %316 = vmatpush1.bf16.msra.mxu0 %v279
      %317 = vmatprep.subr.bf16.mxu0 0
      %318 = vmatpush1.bf16.msra.mxu0 %v280
      %319 = vmatprep.subr.bf16.mxu0 0
      %320 = vmatpush1.bf16.msra.mxu0 %v281
      %321 = vmatprep.subr.bf16.mxu0 0
      %322 = vmatpush1.bf16.msra.mxu0 %v282
      %323 = vmatprep.subr.bf16.mxu0 0
      %324 = vmatpush1.bf16.msra.mxu0 0
      %325 = vmatprep.subr.bf16.mxu0 0
      %326 = vmatpush1.bf16.msra.mxu0 0
      %327 = vmatprep.subr.bf16.mxu0 0
      %328 = vmatpush1.bf16.msra.mxu0 0
      %329 = vmatprep.subr.bf16.mxu0 0
      %330 = vmatpush1.bf16.msra.mxu0 0
      %331 = vmatprep.subr.bf16.mxu0 0
      %332 = vmatpush1.bf16.msra.mxu0 0
      %333 = vmatprep.subr.bf16.mxu0 0
      %334 = vmatpush1.bf16.msra.mxu0 0
      %335 = vmatprep.subr.bf16.mxu0 0
      %336 = vmatpush1.bf16.msra.mxu0 0
      %337 = vmatprep.subr.bf16.mxu0 0
      %338 = vmatpush1.bf16.msra.mxu0 0
      %339 = vmatprep.mubr.bf16.mxu0 0
      %340 = vmatmul.mubr.bf16.gmra.mrb[0].mxu0 %v299
      %v341 = vpop.f32.mrb[0].mxu0
      %v342 = vadd.f32 0.0, %v341
      %v343 = vpop.f32.mrb[0].mxu0
      %v344 = vpop.f32.mrb[0].mxu0
      %v345 = vadd.f32 0.0, %v344
      %v346 = vpop.f32.mrb[0].mxu0
      %347 = vmatprep.mubr.bf16.mxu0 0
      %348 = vmatmul.mubr.bf16.gmra.mrb[0].mxu0 %v300
      %v349 = vpop.f32.mrb[0].mxu0
      %v350 = vadd.f32 0.0, %v349
      %v351 = vpop.f32.mrb[0].mxu0
      %v352 = vpop.f32.mrb[0].mxu0
      %v353 = vadd.f32 0.0, %v352
      %v354 = vpop.f32.mrb[0].mxu0
      %355 = vmatprep.mubr.bf16.mxu0 0
      %356 = vmatmul.mubr.bf16.gmra.mrb[0].mxu0 %v301
      %v357 = vpop.f32.mrb[0].mxu0
      %v358 = vadd.f32 0.0, %v357
      %v359 = vpop.f32.mrb[0].mxu0
      %v360 = vpop.f32.mrb[0].mxu0
      %v361 = vadd.f32 0.0, %v360
      %v362 = vpop.f32.mrb[0].mxu0
      %363 = vmatprep.mubr.bf16.mxu0 0
      %364 = vmatmul.mubr.bf16.gmra.mrb[0].mxu0 %v302
      %v365 = vpop.f32.mrb[0].mxu0
      %v366 = vadd.f32 0.0, %v365
      %v367 = vpop.f32.mrb[0].mxu0
      %v368 = vpop.f32.mrb[0].mxu0
      %v369 = vadd.f32 0.0, %v368
      %v370 = vpop.f32.mrb[0].mxu0
      %371 = vdwg.mxu0
      %v372 = vld [vmem:[%s242] sm:$0xf]
      %v373 = vld [vmem:[%s242 + $0x4] sm:$0xf]
      %v374 = vld [vmem:[%s242 + $0x8] sm:$0xf]
      %v375 = vld [vmem:[%s242 + $0xc] sm:$0xf]
      %v376 = vld [vmem:[%s242 + $0x10] sm:$0xf]
      %v377 = vld [vmem:[%s242 + $0x14] sm:$0xf]
      %v378 = vld [vmem:[%s242 + $0x18] sm:$0xf]
      %v379 = vld [vmem:[%s242 + $0x1c] sm:$0xf]
      %v380 = vld [vmem:[%s3] sm:$0xff]
      %v381 = vld [vmem:[%s3 + $0x8] sm:$0xff]
      %v382 = vld [vmem:[%s3 + $0x10] sm:$0xff]
      %v383 = vld [vmem:[%s3 + $0x18] sm:$0xff]
      %v384 = vld [vmem:[%s3 + $0x20] sm:$0xff]
      %v385 = vld [vmem:[%s3 + $0x28] sm:$0xff]
      %v386 = vld [vmem:[%s3 + $0x30] sm:$0xff]
      %v387 = vld [vmem:[%s3 + $0x38] sm:$0xff]
      %v388 = vld [vmem:[%s3 + $0x40] sm:$0xff]
      %v389 = vld [vmem:[%s3 + $0x48] sm:$0xff]
      %v390 = vld [vmem:[%s3 + $0x50] sm:$0xff]
      %v391 = vld [vmem:[%s3 + $0x58] sm:$0xff]
      %v392 = vld [vmem:[%s3 + $0x60] sm:$0xff]
      %v393 = vld [vmem:[%s3 + $0x68] sm:$0xff]
      %v394 = vld [vmem:[%s3 + $0x70] sm:$0xff]
      %v395 = vld [vmem:[%s3 + $0x78] sm:$0xff]
      %v396 = vpack.c.bf16 %v381, %v380
      %v397 = vpack.c.bf16 %v383, %v382
      %v398 = vpack.c.bf16 %v385, %v384
      %v399 = vpack.c.bf16 %v387, %v386
      %v400 = vpack.c.bf16 %v389, %v388
      %v401 = vpack.c.bf16 %v391, %v390
      %v402 = vpack.c.bf16 %v393, %v392
      %v403 = vpack.c.bf16 %v395, %v394
      %v412 = vunpack.c.l.b16 %v372
      %v413 = vunpack.c.l.b16 %v373
      %v414 = vunpack.c.l.b16 %v374
      %v415 = vunpack.c.l.b16 %v375
      %v416 = vunpack.c.l.b16 %v376
      %v417 = vunpack.c.l.b16 %v377
      %v418 = vunpack.c.l.b16 %v378
      %v419 = vunpack.c.l.b16 %v379
      %v420 = vpack.c.b16 %v413, %v412
      %v421 = vpack.c.b16 %v415, %v414
      %v422 = vpack.c.b16 %v417, %v416
      %v423 = vpack.c.b16 %v419, %v418
      %428 = vmatprep.subr.bf16.mxu0 0
      %429 = vmatpush1.bf16.msra.mxu0 %v396
      %430 = vmatprep.subr.bf16.mxu0 0
      %431 = vmatpush1.bf16.msra.mxu0 %v397
      %432 = vmatprep.subr.bf16.mxu0 0
      %433 = vmatpush1.bf16.msra.mxu0 %v398
      %434 = vmatprep.subr.bf16.mxu0 0
      %435 = vmatpush1.bf16.msra.mxu0 %v399
      %436 = vmatprep.subr.bf16.mxu0 0
      %437 = vmatpush1.bf16.msra.mxu0 %v400
      %438 = vmatprep.subr.bf16.mxu0 0
      %439 = vmatpush1.bf16.msra.mxu0 %v401
      %440 = vmatprep.subr.bf16.mxu0 0
      %441 = vmatpush1.bf16.msra.mxu0 %v402
      %442 = vmatprep.subr.bf16.mxu0 0
      %443 = vmatpush1.bf16.msra.mxu0 %v403
      %444 = vmatprep.subr.bf16.mxu0 0
      %445 = vmatpush1.bf16.msra.mxu0 0
      %446 = vmatprep.subr.bf16.mxu0 0
      %447 = vmatpush1.bf16.msra.mxu0 0
      %448 = vmatprep.subr.bf16.mxu0 0
      %449 = vmatpush1.bf16.msra.mxu0 0
      %450 = vmatprep.subr.bf16.mxu0 0
      %451 = vmatpush1.bf16.msra.mxu0 0
      %452 = vmatprep.subr.bf16.mxu0 0
      %453 = vmatpush1.bf16.msra.mxu0 0
      %454 = vmatprep.subr.bf16.mxu0 0
      %455 = vmatpush1.bf16.msra.mxu0 0
      %456 = vmatprep.subr.bf16.mxu0 0
      %457 = vmatpush1.bf16.msra.mxu0 0
      %458 = vmatprep.subr.bf16.mxu0 0
      %459 = vmatpush1.bf16.msra.mxu0 0
      %460 = vmatprep.mubr.bf16.mxu0 0
      %461 = vmatmul.mubr.bf16.gmra.mrb[0].mxu0 %v420
      %v462 = vpop.f32.mrb[0].mxu0
      %v463 = vadd.f32 0.0, %v462
      %v464 = vpop.f32.mrb[0].mxu0
      %v465 = vpop.f32.mrb[0].mxu0
      %v466 = vadd.f32 0.0, %v465
      %v467 = vpop.f32.mrb[0].mxu0
      %468 = vmatprep.mubr.bf16.mxu0 0
      %469 = vmatmul.mubr.bf16.gmra.mrb[0].mxu0 %v421
      %v470 = vpop.f32.mrb[0].mxu0
      %v471 = vadd.f32 0.0, %v470
      %v472 = vpop.f32.mrb[0].mxu0
      %v473 = vpop.f32.mrb[0].mxu0
      %v474 = vadd.f32 0.0, %v473
      %v475 = vpop.f32.mrb[0].mxu0
      %476 = vmatprep.mubr.bf16.mxu0 0
      %477 = vmatmul.mubr.bf16.gmra.mrb[0].mxu0 %v422
      %v478 = vpop.f32.mrb[0].mxu0
      %v479 = vadd.f32 0.0, %v478
      %v480 = vpop.f32.mrb[0].mxu0
      %v481 = vpop.f32.mrb[0].mxu0
      %v482 = vadd.f32 0.0, %v481
      %v483 = vpop.f32.mrb[0].mxu0
      %484 = vmatprep.mubr.bf16.mxu0 0
      %485 = vmatmul.mubr.bf16.gmra.mrb[0].mxu0 %v423
      %v486 = vpop.f32.mrb[0].mxu0
      %v487 = vadd.f32 0.0, %v486
      %v488 = vpop.f32.mrb[0].mxu0
      %v489 = vpop.f32.mrb[0].mxu0
      %v490 = vadd.f32 0.0, %v489
      %v491 = vpop.f32.mrb[0].mxu0
      %492 = vdwg.mxu0
      %v493 = vmul.f32 %v342, 0.6
      %v494 = vmul.f32 %v345, 0.6
      %v495 = vmul.f32 %v350, 0.6
      %v496 = vmul.f32 %v353, 0.6
      %v497 = vmul.f32 %v358, 0.6
      %v498 = vmul.f32 %v361, 0.6
      %v499 = vmul.f32 %v366, 0.6
      %v500 = vmul.f32 %v369, 0.6
      %v501 = vmul.f32 %v463, 0.4
      %v502 = vmul.f32 %v466, 0.4
      %v503 = vmul.f32 %v471, 0.4
      %v504 = vmul.f32 %v474, 0.4
      %v505 = vmul.f32 %v479, 0.4
      %v506 = vmul.f32 %v482, 0.4
      %v507 = vmul.f32 %v487, 0.4
      %v508 = vmul.f32 %v490, 0.4
      %v509 = vadd.f32 %v493, %v501
      %v510 = vadd.f32 %v494, %v502
      %v511 = vadd.f32 %v495, %v503
      %v512 = vadd.f32 %v496, %v504
      %v513 = vadd.f32 %v497, %v505
      %v514 = vadd.f32 %v498, %v506
      %v515 = vadd.f32 %v499, %v507
      %v516 = vadd.f32 %v500, %v508
      %v517 = vpack.c.bf16 %v510, %v509
      %v518 = vpack.c.bf16 %v512, %v511
      %v519 = vpack.c.bf16 %v514, %v513
      %v520 = vpack.c.bf16 %v516, %v515
      %v521 = vld [vmem:[%s4] sm:$0xf]
      %v522 = vld [vmem:[%s4 + $0x4] sm:$0xf]
      %v523 = vld [vmem:[%s4 + $0x8] sm:$0xf]
      %v524 = vld [vmem:[%s4 + $0xc] sm:$0xf]
      %v525 = vld [vmem:[%s4 + $0x10] sm:$0xf]
      %v526 = vld [vmem:[%s4 + $0x14] sm:$0xf]
      %v527 = vld [vmem:[%s4 + $0x18] sm:$0xf]
      %v528 = vld [vmem:[%s4 + $0x1c] sm:$0xf]
      %v529 = vld [vmem:[%s4 + $0x20] sm:$0xf]
      %v530 = vld [vmem:[%s4 + $0x24] sm:$0xf]
      %v531 = vld [vmem:[%s4 + $0x28] sm:$0xf]
      %v532 = vld [vmem:[%s4 + $0x2c] sm:$0xf]
      %v533 = vld [vmem:[%s4 + $0x30] sm:$0xf]
      %v534 = vld [vmem:[%s4 + $0x34] sm:$0xf]
      %v535 = vld [vmem:[%s4 + $0x38] sm:$0xf]
      %v536 = vld [vmem:[%s4 + $0x3c] sm:$0xf]
      %v553 = vunpack.c.l.b16 %v521
      %v554 = vunpack.c.l.b16 %v522
      %v555 = vunpack.c.l.b16 %v523
      %v556 = vunpack.c.l.b16 %v524
      %v557 = vunpack.c.l.b16 %v525
      %v558 = vunpack.c.l.b16 %v526
      %v559 = vunpack.c.l.b16 %v527
      %v560 = vunpack.c.l.b16 %v528
      %v561 = vunpack.c.l.b16 %v529
      %v562 = vunpack.c.l.b16 %v530
      %v563 = vunpack.c.l.b16 %v531
      %v564 = vunpack.c.l.b16 %v532
      %v565 = vunpack.c.l.b16 %v533
      %v566 = vunpack.c.l.b16 %v534
      %v567 = vunpack.c.l.b16 %v535
      %v568 = vunpack.c.l.b16 %v536
      %v569 = vpack.c.b16 %v554, %v553
      %v570 = vpack.c.b16 %v556, %v555
      %v571 = vpack.c.b16 %v558, %v557
      %v572 = vpack.c.b16 %v560, %v559
      %v573 = vpack.c.b16 %v562, %v561
      %v574 = vpack.c.b16 %v564, %v563
      %v575 = vpack.c.b16 %v566, %v565
      %v576 = vpack.c.b16 %v568, %v567
      %585 = vmatprep.subr.bf16.mxu0 0
      %586 = vmatpush1.bf16.msra.mxu0 %v569
      %587 = vmatprep.subr.bf16.mxu0 0
      %588 = vmatpush1.bf16.msra.mxu0 %v570
      %589 = vmatprep.subr.bf16.mxu0 0
      %590 = vmatpush1.bf16.msra.mxu0 %v571
      %591 = vmatprep.subr.bf16.mxu0 0
      %592 = vmatpush1.bf16.msra.mxu0 %v572
      %593 = vmatprep.subr.bf16.mxu0 0
      %594 = vmatpush1.bf16.msra.mxu0 %v573
      %595 = vmatprep.subr.bf16.mxu0 0
      %596 = vmatpush1.bf16.msra.mxu0 %v574
      %597 = vmatprep.subr.bf16.mxu0 0
      %598 = vmatpush1.bf16.msra.mxu0 %v575
      %599 = vmatprep.subr.bf16.mxu0 0
      %600 = vmatpush1.bf16.msra.mxu0 %v576
      %601 = vmatprep.subr.bf16.mxu0 0
      %602 = vmatpush1.bf16.msra.mxu0 0
      %603 = vmatprep.subr.bf16.mxu0 0
      %604 = vmatpush1.bf16.msra.mxu0 0
      %605 = vmatprep.subr.bf16.mxu0 0
      %606 = vmatpush1.bf16.msra.mxu0 0
      %607 = vmatprep.subr.bf16.mxu0 0
      %608 = vmatpush1.bf16.msra.mxu0 0
      %609 = vmatprep.subr.bf16.mxu0 0
      %610 = vmatpush1.bf16.msra.mxu0 0
      %611 = vmatprep.subr.bf16.mxu0 0
      %612 = vmatpush1.bf16.msra.mxu0 0
      %613 = vmatprep.subr.bf16.mxu0 0
      %614 = vmatpush1.bf16.msra.mxu0 0
      %615 = vmatprep.subr.bf16.mxu0 0
      %616 = vmatpush1.bf16.msra.mxu0 0
      %617 = vmatprep.mubr.bf16.mxu0 0
      %618 = vmatmul.mubr.bf16.gmra.mrb[0].mxu0 %v517
      %v619 = vpop.f32.mrb[0].mxu0
      %v620 = vadd.f32 0.0, %v619
      %v621 = vpop.f32.mrb[0].mxu0
      %v622 = vpop.f32.mrb[0].mxu0
      %v623 = vadd.f32 0.0, %v622
      %v624 = vpop.f32.mrb[0].mxu0
      %625 = vmatprep.mubr.bf16.mxu0 0
      %626 = vmatmul.mubr.bf16.gmra.mrb[0].mxu0 %v518
      %v627 = vpop.f32.mrb[0].mxu0
      %v628 = vadd.f32 0.0, %v627
      %v629 = vpop.f32.mrb[0].mxu0
      %v630 = vpop.f32.mrb[0].mxu0
      %v631 = vadd.f32 0.0, %v630
      %v632 = vpop.f32.mrb[0].mxu0
      %633 = vmatprep.mubr.bf16.mxu0 0
      %634 = vmatmul.mubr.bf16.gmra.mrb[0].mxu0 %v519
      %v635 = vpop.f32.mrb[0].mxu0
      %v636 = vadd.f32 0.0, %v635
      %v637 = vpop.f32.mrb[0].mxu0
      %v638 = vpop.f32.mrb[0].mxu0
      %v639 = vadd.f32 0.0, %v638
      %v640 = vpop.f32.mrb[0].mxu0
      %641 = vmatprep.mubr.bf16.mxu0 0
      %642 = vmatmul.mubr.bf16.gmra.mrb[0].mxu0 %v520
      %v643 = vpop.f32.mrb[0].mxu0
      %v644 = vadd.f32 0.0, %v643
      %v645 = vpop.f32.mrb[0].mxu0
      %v646 = vpop.f32.mrb[0].mxu0
      %v647 = vadd.f32 0.0, %v646
      %v648 = vpop.f32.mrb[0].mxu0
      %649 = vdwg.mxu0
      %650 = vst [vmem:[%s248] sm:$0xff] %v620
      %651 = vst [vmem:[%s248 + $0x8] sm:$0xff] %v623
      %652 = vst [vmem:[%s248 + $0x10] sm:$0xff] %v628
      %653 = vst [vmem:[%s248 + $0x18] sm:$0xff] %v631
      %654 = vst [vmem:[%s248 + $0x20] sm:$0xff] %v636
      %655 = vst [vmem:[%s248 + $0x28] sm:$0xff] %v639
      %656 = vst [vmem:[%s248 + $0x30] sm:$0xff] %v644
      %657 = vst [vmem:[%s248 + $0x38] sm:$0xff] %v647
      %s658 = smul.u32 8, %s16
      %p659 = scmp.lt.s32.totalorder %s658, 15
      %s660 = scalar_select %p659, %s658, 15
      %s661 = smul.addr %s660, 8
      %s662 = scalar_lea.vmem %s5, %s661
      // Predicated region
      $region41: #{hitsgnn_forward.5} parent=39 // pred_check
        %p663 = pneg %p149
      $region42: #{hitsgnn_forward.5} parent=39 // pred_check_branch
        %665 = sbr.rel (%p663) target = $region44
      $region43: #{hitsgnn_forward.5} parent=39 // pred_region
        %s666 = smul.u32 8, %s16
      $region44: #{hitsgnn_forward.5} parent=39 // pred_fallthru
        _
    $region40: #{hitsgnn_forward.5} parent=5 // pred_fallthru
      _
    %p667 = scmp.le.s32.totalorder 2, %s11
    // Predicated region
    $region45: #{hitsgnn_forward.5} parent=5 // pred_check
      %p668 = pneg %p667
    $region46: #{hitsgnn_forward.5} parent=5 // pred_check_branch
      %670 = sbr.rel (%p668) target = $region48
    $region47: #{hitsgnn_forward.5} parent=5 // pred_region
      %s671 = ssub.s32 %s11, 2
      // Predicated region
      $region49: #{hitsgnn_forward.5} parent=47 // pred_check
        %p672 = pneg %p155
      $region50: #{hitsgnn_forward.5} parent=47 // pred_check_branch
        %674 = sbr.rel (%p672) target = $region52
      $region51: #{hitsgnn_forward.5} parent=47 // pred_region
        %s675 = smul.u32 8, %s17
        %p676 = scmp.lt.s32.totalorder %s675, 15
        %s677 = scalar_select %p676, %s675, 15
        %s678 = smul.addr %s677, 8
        %s679 = scalar_lea.vmem %s5, %s678
      $region52: #{hitsgnn_forward.5} parent=47 // pred_fallthru
        _
    $region48: #{hitsgnn_forward.5} parent=5 // pred_fallthru
      _
  $region6: #{hitsgnn_forward.5} parent=0 // loop_footer
    %s15 = sadd.s32 1, %s11
  $region7: #{hitsgnn_forward.5} parent=0 // loop_footer_branch
    %10 = sbr.rel target = $region3
  $region8: #{hitsgnn_forward.5} parent=0 // loop_exit
    _

</llo_original>
